<compile_context>
chip_gen: v7x
topology: tpu7x:2x2x1
jax: 0.10.0
libtpu: 0.0.40
codegen_flags: <defaults>
</compile_context>

<pallas_src>
import math

import jax
import jax.numpy as jnp
from jax.experimental import pallas as pl
from jax.experimental.pallas import tpu as pltpu

# ----------------------------- config (BERT-like) ---------------------------
HIDDEN = 32          # config.hidden_size
NUM_HEADS = 4        # config.num_attention_heads
HEAD_DIM = HIDDEN // NUM_HEADS
INTER = 64           # config.intermediate_size
LN_EPS = 1e-12       # BertLayerNorm eps
SEQ = 8              # number of graph nodes
BATCH = 2


def _layer_norm(x, gamma, beta):
    mean = jnp.mean(x, axis=-1, keepdims=True)
    var = jnp.mean((x - mean) ** 2, axis=-1, keepdims=True)
    xhat = (x - mean) * jax.lax.rsqrt(var + LN_EPS)
    return xhat * gamma + beta


def _gelu(x):
    # exact (erf-based) gelu, matching the BERT reference implementation
    return x * 0.5 * (1.0 + jax.lax.erf(x / math.sqrt(2.0)))


def graph_layer_kernel(x_ref, mask_ref, wqkv_ref, woi_ref, w2_ref,
                       bqkv_ref, ln_ref, bi_ref, out_ref):
    x = x_ref[0]                            # (L, H)   current graph
    mask = mask_ref[0]                      # (L, L)   additive attention mask

    bqkv = bqkv_ref[...]                    # (1, 3H)  full-row
    bo   = ln_ref[0:1, :]                   # (1, H)   full-row slices
    g1   = ln_ref[1:2, :]
    b1   = ln_ref[2:3, :]
    b2   = ln_ref[3:4, :]
    g2   = ln_ref[4:5, :]
    b2b  = ln_ref[5:6, :]
    bi   = bi_ref[...]                      # (1, I)

    # ---- fused Q/K/V projection (1/sqrt(head_dim) folded into Wq/bq) --------
    qkv = jnp.dot(x, wqkv_ref[...], preferred_element_type=jnp.float32) + bqkv

    # ---- multi-head self attention (heads unrolled; ctx kept in vregs) ------
    # TODO(synk): fold the 4 head matmuls into two batched dot_generals once
    # L/HEAD_DIM are large enough for the relayout to pay off.
    ctx_heads = []
    for h in range(NUM_HEADS):
        lo = h * HEAD_DIM
        qh = qkv[:, lo:lo + HEAD_DIM]                                   # (L, dH)
        kh = qkv[:, HIDDEN + lo:HIDDEN + lo + HEAD_DIM]                 # (L, dH)
        vh = qkv[:, 2 * HIDDEN + lo:2 * HIDDEN + lo + HEAD_DIM]         # (L, dH)
        # q @ k^T without an explicit transpose: contract dim 1 with dim 1
        scores = jax.lax.dot_general(qh, kh, (((1,), (1,)), ((), ())),
                                     preferred_element_type=jnp.float32)
        scores = scores + mask
        scores = scores - jnp.max(scores, axis=-1, keepdims=True)
        p = jnp.exp(scores)
        p = p * pl.reciprocal(jnp.sum(p, axis=-1, keepdims=True), approx=True)
        ctx_heads.append(jnp.dot(p, vh, preferred_element_type=jnp.float32))
    ctx = jnp.concatenate(ctx_heads, axis=1)                            # (L, H)

    woi = woi_ref[...]                      # (H, H + I) = Wo | Wi

    # ---- BertSelfOutput: dense + residual + LayerNorm ------------------------
    attn_proj = jnp.dot(ctx, woi[:, 0:HIDDEN],
                        preferred_element_type=jnp.float32) + bo
    attn_out = _layer_norm(attn_proj + x, g1, b1)

    # ---- BertIntermediate: dense + gelu (exact erf form) ---------------------
    inter = _gelu(jnp.dot(attn_out, woi[:, HIDDEN:HIDDEN + INTER],
                          preferred_element_type=jnp.float32) + bi)

    # ---- BertOutput: dense + residual + LayerNorm ----------------------------
    ffn = jnp.dot(inter, w2_ref[...], preferred_element_type=jnp.float32) + b2
    out_ref[0] = _layer_norm(ffn + attn_out, g2, b2b)


def prepare_graph_layer_params(params):
    """One-time packing of the 16 weight/bias/LN tensors into 6 slabs.

    Called once at setup (NOT per forward) so the hot path carries no XLA
    concat / pad / scale ops.
    """
    scale = 1.0 / math.sqrt(HEAD_DIM)
    wqkv = jnp.concatenate(
        [params["wq"] * scale, params["wk"], params["wv"]], axis=1)   # (H, 3H)
    bqkv = jnp.concatenate(
        [params["bq"] * scale, params["bk"], params["bv"]], axis=1)   # (1, 3H)
    woi = jnp.concatenate([params["wo"], params["wi"]], axis=1)       # (H, H+I)
    # LayerNorm / bias slab: one full-width (H) row per parameter, padded to 8
    # sublanes so every in-kernel row slice is a free full-lane read.
    ln = jnp.concatenate(
        [params[n] for n in ["bo", "g1", "b1", "b2", "g2", "b2b"]]
        + [jnp.zeros((2, HIDDEN), jnp.float32)], axis=0)              # (8, H)
    return {
        "wqkv": wqkv, "bqkv": bqkv, "woi": woi,
        "w2": params["w2"], "ln": ln, "bi": params["bi"],
    }


def graph_layer(visn_feats, visn_attention_mask, packed, graph_sprels=None):
    """visn_feats: (B, L, H); visn_attention_mask: (B, 1, 1, L) additive;
    graph_sprels: optional (B, 1, L, L) additive; packed = prepared params."""
    B, L, H = visn_feats.shape
    assert H == HIDDEN

    # per-graph additive mask (broadcast over heads/rows as needed)
    mask = visn_attention_mask
    if graph_sprels is not None:
        mask = mask + graph_sprels
    mask = jnp.broadcast_to(mask, (B, 1, L, L)).reshape(B, L, L)

    const2 = lambda b: (0, 0)   # weights: constant block index -> VMEM-resident
    out = pl.pallas_call(
        graph_layer_kernel,
        out_shape=jax.ShapeDtypeStruct((B, L, H), jnp.float32),
        grid_spec=pltpu.PrefetchScalarGridSpec(
            num_scalar_prefetch=0,
            grid=(B,),
            in_specs=[
                pl.BlockSpec((1, L, H), lambda b: (b, 0, 0)),          # x
                pl.BlockSpec((1, L, L), lambda b: (b, 0, 0)),          # mask
                pl.BlockSpec((HIDDEN, 3 * HIDDEN), const2),            # Wqkv
                pl.BlockSpec((HIDDEN, HIDDEN + INTER), const2),        # Wo|Wi
                pl.BlockSpec((INTER, HIDDEN), const2),                 # W2
                pl.BlockSpec((1, 3 * HIDDEN), const2),                 # bqkv
                pl.BlockSpec((8, HIDDEN), const2),                     # ln slab
                pl.BlockSpec((1, INTER), const2),                      # bi
            ],
            out_specs=pl.BlockSpec((1, L, H), lambda b: (b, 0, 0)),
        ),
        compiler_params=pltpu.CompilerParams(
            dimension_semantics=("parallel",)),   # v7x: shard graphs across TCs
    )(visn_feats, mask, packed["wqkv"], packed["woi"], packed["w2"],
      packed["bqkv"], packed["ln"], packed["bi"])
    return out


# ------------------------- pure-JAX reference (for check) -------------------
def graph_layer_ref(x, attn_mask, params, graph_sprels=None):
    B, L, H = x.shape
    mask = attn_mask + graph_sprels if graph_sprels is not None else attn_mask
    mask = jnp.broadcast_to(mask, (B, 1, L, L))

    def proj(t, w, b):
        return t @ w + b

    q = proj(x, params["wq"], params["bq"]).reshape(B, L, NUM_HEADS, HEAD_DIM).transpose(0, 2, 1, 3)
    k = proj(x, params["wk"], params["bk"]).reshape(B, L, NUM_HEADS, HEAD_DIM).transpose(0, 2, 1, 3)
    v = proj(x, params["wv"], params["bv"]).reshape(B, L, NUM_HEADS, HEAD_DIM).transpose(0, 2, 1, 3)
    scores = jnp.einsum("bhld,bhmd->bhlm", q, k) / math.sqrt(HEAD_DIM) + mask
    p = jax.nn.softmax(scores, axis=-1)
    ctx = jnp.einsum("bhlm,bhmd->bhld", p, v).transpose(0, 2, 1, 3).reshape(B, L, H)
    attn_out = _layer_norm(ctx @ params["wo"] + params["bo"] + x, params["g1"], params["b1"])
    inter = _gelu(attn_out @ params["wi"] + params["bi"])
    return _layer_norm(inter @ params["w2"] + params["b2"] + attn_out, params["g2"], params["b2b"])


def init_params(key):
    ks = jax.random.split(key, 8)
    std = 0.02
    return {
        "wq": jax.random.normal(ks[0], (HIDDEN, HIDDEN), jnp.float32) * std,
        "wk": jax.random.normal(ks[1], (HIDDEN, HIDDEN), jnp.float32) * std,
        "wv": jax.random.normal(ks[2], (HIDDEN, HIDDEN), jnp.float32) * std,
        "wo": jax.random.normal(ks[3], (HIDDEN, HIDDEN), jnp.float32) * std,
        "wi": jax.random.normal(ks[4], (HIDDEN, INTER), jnp.float32) * std,
        "w2": jax.random.normal(ks[5], (INTER, HIDDEN), jnp.float32) * std,
        "bq": jnp.zeros((1, HIDDEN), jnp.float32),
        "bk": jnp.zeros((1, HIDDEN), jnp.float32),
        "bv": jnp.zeros((1, HIDDEN), jnp.float32),
        "bo": jnp.zeros((1, HIDDEN), jnp.float32),
        "bi": jnp.zeros((1, INTER), jnp.float32),
        "b2": jnp.zeros((1, HIDDEN), jnp.float32),
        "g1": jnp.ones((1, HIDDEN), jnp.float32),
        "b1": jnp.zeros((1, HIDDEN), jnp.float32),
        "g2": jnp.ones((1, HIDDEN), jnp.float32),
        "b2b": jnp.zeros((1, HIDDEN), jnp.float32),
    }


if __name__ == "__main__":
    key = jax.random.PRNGKey(0)
    k_x, k_p, k_s = jax.random.split(key, 3)

    visn_feats = jax.random.normal(k_x, (BATCH, SEQ, HIDDEN), jnp.float32)

    # additive attention mask: 0 for valid tokens, -10000 for padded ones
    lengths = jnp.array([SEQ, SEQ - 2], jnp.int32)
    valid = (jnp.arange(SEQ)[None, :] < lengths[:, None]).astype(jnp.float32)
    visn_attention_mask = ((1.0 - valid) * -10000.0).reshape(BATCH, 1, 1, SEQ)

    graph_sprels = jax.random.normal(k_s, (BATCH, 1, SEQ, SEQ), jnp.float32) * 0.1

    params = init_params(k_p)
    packed = prepare_graph_layer_params(params)   # one-time slab packing

    fwd = jax.jit(graph_layer)                    # mask prep fuses with the call
    out = fwd(visn_feats, visn_attention_mask, packed, graph_sprels)
    out = jax.block_until_ready(out)

    ref = graph_layer_ref(visn_feats, visn_attention_mask, params, graph_sprels)
    assert out.shape == (BATCH, SEQ, HIDDEN)
    # approx=True reciprocal in the softmax perturbs low-order bits; allow a
    # slightly looser relative tolerance while keeping atol at 1e-4.
    assert jnp.allclose(out, ref, atol=1e-4, rtol=1e-3), "mismatch vs reference"

    print("KERNEL_OK")
</pallas_src>

<mosaic_0001>
module attributes {stable_mosaic.version = 11 : i64} {
  func.func @graph_layer_kernel(%arg0: i32, %arg1: memref<1x8x32xf32, #tpu.memory_space<vmem>>, %arg2: memref<1x8x8xf32, #tpu.memory_space<vmem>>, %arg3: memref<32x96xf32, #tpu.memory_space<vmem>>, %arg4: memref<32x96xf32, #tpu.memory_space<vmem>>, %arg5: memref<64x32xf32, #tpu.memory_space<vmem>>, %arg6: memref<1x96xf32, #tpu.memory_space<vmem>>, %arg7: memref<8x32xf32, #tpu.memory_space<vmem>>, %arg8: memref<1x64xf32, #tpu.memory_space<vmem>>, %arg9: memref<1x8x32xf32, #tpu.memory_space<vmem>>) attributes {dimension_semantics = [#tpu.dimension_semantics<parallel>], iteration_bounds = array<i64: 2>, scalar_prefetch = 0 : i64, scratch_operands = 0 : i64, tpu.core_type = #tpu.core_type<tc>, window_params = [{transform_indices = @transform_0, window_bounds = array<i64: 1, 8, 32>}, {transform_indices = @transform_1, window_bounds = array<i64: 1, 8, 8>}, {pipeline_mode = #tpu.pipeline_mode<synchronous>, transform_indices = @transform_2, window_bounds = array<i64: 32, 96>}, {pipeline_mode = #tpu.pipeline_mode<synchronous>, transform_indices = @transform_3, window_bounds = array<i64: 32, 96>}, {pipeline_mode = #tpu.pipeline_mode<synchronous>, transform_indices = @transform_4, window_bounds = array<i64: 64, 32>}, {pipeline_mode = #tpu.pipeline_mode<synchronous>, transform_indices = @transform_5, window_bounds = array<i64: 1, 96>}, {pipeline_mode = #tpu.pipeline_mode<synchronous>, transform_indices = @transform_6, window_bounds = array<i64: 8, 32>}, {pipeline_mode = #tpu.pipeline_mode<synchronous>, transform_indices = @transform_7, window_bounds = array<i64: 1, 64>}, {transform_indices = @transform_8, window_bounds = array<i64: 1, 8, 32>}]} {
    %c0 = arith.constant 0 : index
    %c0_0 = arith.constant 0 : index
    %c0_1 = arith.constant 0 : index
    %0 = vector.load %arg1[%c0, %c0_0, %c0_1] : memref<1x8x32xf32, #tpu.memory_space<vmem>>, vector<1x8x32xf32>
    %1 = vector.shape_cast %0 : vector<1x8x32xf32> to vector<8x32xf32>
    %c0_2 = arith.constant 0 : index
    %c0_3 = arith.constant 0 : index
    %c0_4 = arith.constant 0 : index
    %2 = vector.load %arg2[%c0_2, %c0_3, %c0_4] : memref<1x8x8xf32, #tpu.memory_space<vmem>>, vector<1x8x8xf32>
    %3 = vector.shape_cast %2 : vector<1x8x8xf32> to vector<8x8xf32>
    %c0_5 = arith.constant 0 : index
    %c0_6 = arith.constant 0 : index
    %4 = vector.load %arg6[%c0_5, %c0_6] : memref<1x96xf32, #tpu.memory_space<vmem>>, vector<1x96xf32>
    %c0_7 = arith.constant 0 : index
    %c0_8 = arith.constant 0 : index
    %5 = vector.load %arg7[%c0_7, %c0_8] : memref<8x32xf32, #tpu.memory_space<vmem>>, vector<1x32xf32>
    %c1 = arith.constant 1 : index
    %c0_9 = arith.constant 0 : index
    %6 = vector.load %arg7[%c1, %c0_9] : memref<8x32xf32, #tpu.memory_space<vmem>>, vector<1x32xf32>
    %c2 = arith.constant 2 : index
    %c0_10 = arith.constant 0 : index
    %7 = vector.load %arg7[%c2, %c0_10] : memref<8x32xf32, #tpu.memory_space<vmem>>, vector<1x32xf32>
    %c3 = arith.constant 3 : index
    %c0_11 = arith.constant 0 : index
    %8 = vector.load %arg7[%c3, %c0_11] : memref<8x32xf32, #tpu.memory_space<vmem>>, vector<1x32xf32>
    %c4 = arith.constant 4 : index
    %c0_12 = arith.constant 0 : index
    %9 = vector.load %arg7[%c4, %c0_12] : memref<8x32xf32, #tpu.memory_space<vmem>>, vector<1x32xf32>
    %c5 = arith.constant 5 : index
    %c0_13 = arith.constant 0 : index
    %10 = vector.load %arg7[%c5, %c0_13] : memref<8x32xf32, #tpu.memory_space<vmem>>, vector<1x32xf32>
    %c0_14 = arith.constant 0 : index
    %c0_15 = arith.constant 0 : index
    %11 = vector.load %arg8[%c0_14, %c0_15] : memref<1x64xf32, #tpu.memory_space<vmem>>, vector<1x64xf32>
    %c0_16 = arith.constant 0 : index
    %c0_17 = arith.constant 0 : index
    %12 = vector.load %arg3[%c0_16, %c0_17] : memref<32x96xf32, #tpu.memory_space<vmem>>, vector<32x96xf32>
    %cst = arith.constant dense<0.000000e+00> : vector<8x96xf32>
    %13 = tpu.matmul %1, %12, %cst {dimension_numbers = #tpu.dot_dimension_numbers<[1], [0], [0], [1], [0, 0, 1, 1], [], []>} : vector<8x32xf32>, vector<32x96xf32>, vector<8x96xf32> -> vector<8x96xf32>
    %14 = vector.broadcast %4 : vector<1x96xf32> to vector<8x96xf32>
    %15 = arith.addf %13, %14 : vector<8x96xf32>
    %16 = vector.extract_strided_slice %15 {offsets = [0, 0], sizes = [8, 8], strides = [1, 1]} : vector<8x96xf32> to vector<8x8xf32>
    %17 = vector.extract_strided_slice %15 {offsets = [0, 32], sizes = [8, 8], strides = [1, 1]} : vector<8x96xf32> to vector<8x8xf32>
    %18 = vector.extract_strided_slice %15 {offsets = [0, 64], sizes = [8, 8], strides = [1, 1]} : vector<8x96xf32> to vector<8x8xf32>
    %cst_18 = arith.constant dense<0.000000e+00> : vector<8x8xf32>
    %19 = tpu.matmul %16, %17, %cst_18 {dimension_numbers = #tpu.dot_dimension_numbers<[1], [1], [0], [0], [0, 0, 1, 0], [], []>} : vector<8x8xf32>, vector<8x8xf32>, vector<8x8xf32> -> vector<8x8xf32>
    %20 = arith.addf %19, %3 : vector<8x8xf32>
    %cst_19 = arith.constant dense<0xFF800000> : vector<8xf32>
    %21 = vector.multi_reduction <maximumf>, %20, %cst_19 [1] : vector<8x8xf32> to vector<8xf32>
    %22 = vector.shape_cast %21 : vector<8xf32> to vector<8x1xf32>
    %23 = vector.broadcast %22 : vector<8x1xf32> to vector<8x8xf32>
    %24 = arith.subf %20, %23 : vector<8x8xf32>
    %25 = math.exp %24 : vector<8x8xf32>
    %cst_20 = arith.constant dense<0.000000e+00> : vector<8xf32>
    %26 = vector.multi_reduction <add>, %25, %cst_20 [1] : vector<8x8xf32> to vector<8xf32>
    %27 = vector.shape_cast %26 : vector<8xf32> to vector<8x1xf32>
    %28 = tpu.reciprocal %27 {approx = true} : vector<8x1xf32> -> vector<8x1xf32>
    %29 = vector.broadcast %28 : vector<8x1xf32> to vector<8x8xf32>
    %30 = arith.mulf %25, %29 : vector<8x8xf32>
    %cst_21 = arith.constant dense<0.000000e+00> : vector<8x8xf32>
    %31 = tpu.matmul %30, %18, %cst_21 {dimension_numbers = #tpu.dot_dimension_numbers<[1], [0], [0], [1], [0, 0, 1, 1], [], []>} : vector<8x8xf32>, vector<8x8xf32>, vector<8x8xf32> -> vector<8x8xf32>
    %32 = vector.extract_strided_slice %15 {offsets = [0, 8], sizes = [8, 8], strides = [1, 1]} : vector<8x96xf32> to vector<8x8xf32>
    %33 = vector.extract_strided_slice %15 {offsets = [0, 40], sizes = [8, 8], strides = [1, 1]} : vector<8x96xf32> to vector<8x8xf32>
    %34 = vector.extract_strided_slice %15 {offsets = [0, 72], sizes = [8, 8], strides = [1, 1]} : vector<8x96xf32> to vector<8x8xf32>
    %cst_22 = arith.constant dense<0.000000e+00> : vector<8x8xf32>
    %35 = tpu.matmul %32, %33, %cst_22 {dimension_numbers = #tpu.dot_dimension_numbers<[1], [1], [0], [0], [0, 0, 1, 0], [], []>} : vector<8x8xf32>, vector<8x8xf32>, vector<8x8xf32> -> vector<8x8xf32>
    %36 = arith.addf %35, %3 : vector<8x8xf32>
    %cst_23 = arith.constant dense<0xFF800000> : vector<8xf32>
    %37 = vector.multi_reduction <maximumf>, %36, %cst_23 [1] : vector<8x8xf32> to vector<8xf32>
    %38 = vector.shape_cast %37 : vector<8xf32> to vector<8x1xf32>
    %39 = vector.broadcast %38 : vector<8x1xf32> to vector<8x8xf32>
    %40 = arith.subf %36, %39 : vector<8x8xf32>
    %41 = math.exp %40 : vector<8x8xf32>
    %cst_24 = arith.constant dense<0.000000e+00> : vector<8xf32>
    %42 = vector.multi_reduction <add>, %41, %cst_24 [1] : vector<8x8xf32> to vector<8xf32>
    %43 = vector.shape_cast %42 : vector<8xf32> to vector<8x1xf32>
    %44 = tpu.reciprocal %43 {approx = true} : vector<8x1xf32> -> vector<8x1xf32>
    %45 = vector.broadcast %44 : vector<8x1xf32> to vector<8x8xf32>
    %46 = arith.mulf %41, %45 : vector<8x8xf32>
    %cst_25 = arith.constant dense<0.000000e+00> : vector<8x8xf32>
    %47 = tpu.matmul %46, %34, %cst_25 {dimension_numbers = #tpu.dot_dimension_numbers<[1], [0], [0], [1], [0, 0, 1, 1], [], []>} : vector<8x8xf32>, vector<8x8xf32>, vector<8x8xf32> -> vector<8x8xf32>
    %48 = vector.extract_strided_slice %15 {offsets = [0, 16], sizes = [8, 8], strides = [1, 1]} : vector<8x96xf32> to vector<8x8xf32>
    %49 = vector.extract_strided_slice %15 {offsets = [0, 48], sizes = [8, 8], strides = [1, 1]} : vector<8x96xf32> to vector<8x8xf32>
    %50 = vector.extract_strided_slice %15 {offsets = [0, 80], sizes = [8, 8], strides = [1, 1]} : vector<8x96xf32> to vector<8x8xf32>
    %cst_26 = arith.constant dense<0.000000e+00> : vector<8x8xf32>
    %51 = tpu.matmul %48, %49, %cst_26 {dimension_numbers = #tpu.dot_dimension_numbers<[1], [1], [0], [0], [0, 0, 1, 0], [], []>} : vector<8x8xf32>, vector<8x8xf32>, vector<8x8xf32> -> vector<8x8xf32>
    %52 = arith.addf %51, %3 : vector<8x8xf32>
    %cst_27 = arith.constant dense<0xFF800000> : vector<8xf32>
    %53 = vector.multi_reduction <maximumf>, %52, %cst_27 [1] : vector<8x8xf32> to vector<8xf32>
    %54 = vector.shape_cast %53 : vector<8xf32> to vector<8x1xf32>
    %55 = vector.broadcast %54 : vector<8x1xf32> to vector<8x8xf32>
    %56 = arith.subf %52, %55 : vector<8x8xf32>
    %57 = math.exp %56 : vector<8x8xf32>
    %cst_28 = arith.constant dense<0.000000e+00> : vector<8xf32>
    %58 = vector.multi_reduction <add>, %57, %cst_28 [1] : vector<8x8xf32> to vector<8xf32>
    %59 = vector.shape_cast %58 : vector<8xf32> to vector<8x1xf32>
    %60 = tpu.reciprocal %59 {approx = true} : vector<8x1xf32> -> vector<8x1xf32>
    %61 = vector.broadcast %60 : vector<8x1xf32> to vector<8x8xf32>
    %62 = arith.mulf %57, %61 : vector<8x8xf32>
    %cst_29 = arith.constant dense<0.000000e+00> : vector<8x8xf32>
    %63 = tpu.matmul %62, %50, %cst_29 {dimension_numbers = #tpu.dot_dimension_numbers<[1], [0], [0], [1], [0, 0, 1, 1], [], []>} : vector<8x8xf32>, vector<8x8xf32>, vector<8x8xf32> -> vector<8x8xf32>
    %64 = vector.extract_strided_slice %15 {offsets = [0, 24], sizes = [8, 8], strides = [1, 1]} : vector<8x96xf32> to vector<8x8xf32>
    %65 = vector.extract_strided_slice %15 {offsets = [0, 56], sizes = [8, 8], strides = [1, 1]} : vector<8x96xf32> to vector<8x8xf32>
    %66 = vector.extract_strided_slice %15 {offsets = [0, 88], sizes = [8, 8], strides = [1, 1]} : vector<8x96xf32> to vector<8x8xf32>
    %cst_30 = arith.constant dense<0.000000e+00> : vector<8x8xf32>
    %67 = tpu.matmul %64, %65, %cst_30 {dimension_numbers = #tpu.dot_dimension_numbers<[1], [1], [0], [0], [0, 0, 1, 0], [], []>} : vector<8x8xf32>, vector<8x8xf32>, vector<8x8xf32> -> vector<8x8xf32>
    %68 = arith.addf %67, %3 : vector<8x8xf32>
    %cst_31 = arith.constant dense<0xFF800000> : vector<8xf32>
    %69 = vector.multi_reduction <maximumf>, %68, %cst_31 [1] : vector<8x8xf32> to vector<8xf32>
    %70 = vector.shape_cast %69 : vector<8xf32> to vector<8x1xf32>
    %71 = vector.broadcast %70 : vector<8x1xf32> to vector<8x8xf32>
    %72 = arith.subf %68, %71 : vector<8x8xf32>
    %73 = math.exp %72 : vector<8x8xf32>
    %cst_32 = arith.constant dense<0.000000e+00> : vector<8xf32>
    %74 = vector.multi_reduction <add>, %73, %cst_32 [1] : vector<8x8xf32> to vector<8xf32>
    %75 = vector.shape_cast %74 : vector<8xf32> to vector<8x1xf32>
    %76 = tpu.reciprocal %75 {approx = true} : vector<8x1xf32> -> vector<8x1xf32>
    %77 = vector.broadcast %76 : vector<8x1xf32> to vector<8x8xf32>
    %78 = arith.mulf %73, %77 : vector<8x8xf32>
    %cst_33 = arith.constant dense<0.000000e+00> : vector<8x8xf32>
    %79 = tpu.matmul %78, %66, %cst_33 {dimension_numbers = #tpu.dot_dimension_numbers<[1], [0], [0], [1], [0, 0, 1, 1], [], []>} : vector<8x8xf32>, vector<8x8xf32>, vector<8x8xf32> -> vector<8x8xf32>
    %80 = tpu.concatenate %31, %47, %63, %79 in 1 : vector<8x8xf32>, vector<8x8xf32>, vector<8x8xf32>, vector<8x8xf32> -> vector<8x32xf32>
    %c0_34 = arith.constant 0 : index
    %c0_35 = arith.constant 0 : index
    %81 = vector.load %arg4[%c0_34, %c0_35] : memref<32x96xf32, #tpu.memory_space<vmem>>, vector<32x96xf32>
    %82 = vector.extract_strided_slice %81 {offsets = [0, 0], sizes = [32, 32], strides = [1, 1]} : vector<32x96xf32> to vector<32x32xf32>
    %cst_36 = arith.constant dense<0.000000e+00> : vector<8x32xf32>
    %83 = tpu.matmul %80, %82, %cst_36 {dimension_numbers = #tpu.dot_dimension_numbers<[1], [0], [0], [1], [0, 0, 1, 1], [], []>} : vector<8x32xf32>, vector<32x32xf32>, vector<8x32xf32> -> vector<8x32xf32>
    %84 = vector.broadcast %5 : vector<1x32xf32> to vector<8x32xf32>
    %85 = arith.addf %83, %84 : vector<8x32xf32>
    %86 = arith.addf %85, %1 : vector<8x32xf32>
    %cst_37 = arith.constant dense<0.000000e+00> : vector<8xf32>
    %87 = vector.multi_reduction <add>, %86, %cst_37 [1] : vector<8x32xf32> to vector<8xf32>
    %88 = vector.shape_cast %87 : vector<8xf32> to vector<8x1xf32>
    %cst_38 = arith.constant 3.200000e+01 : f32
    %89 = vector.broadcast %cst_38 : f32 to vector<8x1xf32>
    %90 = arith.divf %88, %89 : vector<8x1xf32>
    %91 = vector.broadcast %90 : vector<8x1xf32> to vector<8x32xf32>
    %92 = arith.subf %86, %91 : vector<8x32xf32>
    %93 = arith.mulf %92, %92 : vector<8x32xf32>
    %cst_39 = arith.constant dense<0.000000e+00> : vector<8xf32>
    %94 = vector.multi_reduction <add>, %93, %cst_39 [1] : vector<8x32xf32> to vector<8xf32>
    %95 = vector.shape_cast %94 : vector<8xf32> to vector<8x1xf32>
    %cst_40 = arith.constant 3.200000e+01 : f32
    %96 = vector.broadcast %cst_40 : f32 to vector<8x1xf32>
    %97 = arith.divf %95, %96 : vector<8x1xf32>
    %98 = vector.broadcast %90 : vector<8x1xf32> to vector<8x32xf32>
    %99 = arith.subf %86, %98 : vector<8x32xf32>
    %cst_41 = arith.constant 9.99999996E-13 : f32
    %100 = vector.broadcast %cst_41 : f32 to vector<8x1xf32>
    %101 = arith.addf %97, %100 : vector<8x1xf32>
    %102 = math.rsqrt %101 : vector<8x1xf32>
    %103 = vector.broadcast %102 : vector<8x1xf32> to vector<8x32xf32>
    %104 = arith.mulf %99, %103 : vector<8x32xf32>
    %105 = vector.broadcast %6 : vector<1x32xf32> to vector<8x32xf32>
    %106 = arith.mulf %104, %105 : vector<8x32xf32>
    %107 = vector.broadcast %7 : vector<1x32xf32> to vector<8x32xf32>
    %108 = arith.addf %106, %107 : vector<8x32xf32>
    %109 = vector.extract_strided_slice %81 {offsets = [0, 32], sizes = [32, 64], strides = [1, 1]} : vector<32x96xf32> to vector<32x64xf32>
    %cst_42 = arith.constant dense<0.000000e+00> : vector<8x64xf32>
    %110 = tpu.matmul %108, %109, %cst_42 {dimension_numbers = #tpu.dot_dimension_numbers<[1], [0], [0], [1], [0, 0, 1, 1], [], []>} : vector<8x32xf32>, vector<32x64xf32>, vector<8x64xf32> -> vector<8x64xf32>
    %111 = vector.broadcast %11 : vector<1x64xf32> to vector<8x64xf32>
    %112 = arith.addf %110, %111 : vector<8x64xf32>
    %cst_43 = arith.constant 5.000000e-01 : f32
    %113 = vector.broadcast %cst_43 : f32 to vector<8x64xf32>
    %114 = arith.mulf %112, %113 : vector<8x64xf32>
    %cst_44 = arith.constant 1.41421354 : f32
    %115 = vector.broadcast %cst_44 : f32 to vector<8x64xf32>
    %116 = arith.divf %112, %115 : vector<8x64xf32>
    %117 = math.erf %116 : vector<8x64xf32>
    %cst_45 = arith.constant 1.000000e+00 : f32
    %118 = vector.broadcast %cst_45 : f32 to vector<8x64xf32>
    %119 = arith.addf %118, %117 : vector<8x64xf32>
    %120 = arith.mulf %114, %119 : vector<8x64xf32>
    %c0_46 = arith.constant 0 : index
    %c0_47 = arith.constant 0 : index
    %121 = vector.load %arg5[%c0_46, %c0_47] : memref<64x32xf32, #tpu.memory_space<vmem>>, vector<64x32xf32>
    %cst_48 = arith.constant dense<0.000000e+00> : vector<8x32xf32>
    %122 = tpu.matmul %120, %121, %cst_48 {dimension_numbers = #tpu.dot_dimension_numbers<[1], [0], [0], [1], [0, 0, 1, 1], [], []>} : vector<8x64xf32>, vector<64x32xf32>, vector<8x32xf32> -> vector<8x32xf32>
    %123 = vector.broadcast %8 : vector<1x32xf32> to vector<8x32xf32>
    %124 = arith.addf %122, %123 : vector<8x32xf32>
    %125 = arith.addf %124, %108 : vector<8x32xf32>
    %cst_49 = arith.constant dense<0.000000e+00> : vector<8xf32>
    %126 = vector.multi_reduction <add>, %125, %cst_49 [1] : vector<8x32xf32> to vector<8xf32>
    %127 = vector.shape_cast %126 : vector<8xf32> to vector<8x1xf32>
    %cst_50 = arith.constant 3.200000e+01 : f32
    %128 = vector.broadcast %cst_50 : f32 to vector<8x1xf32>
    %129 = arith.divf %127, %128 : vector<8x1xf32>
    %130 = vector.broadcast %129 : vector<8x1xf32> to vector<8x32xf32>
    %131 = arith.subf %125, %130 : vector<8x32xf32>
    %132 = arith.mulf %131, %131 : vector<8x32xf32>
    %cst_51 = arith.constant dense<0.000000e+00> : vector<8xf32>
    %133 = vector.multi_reduction <add>, %132, %cst_51 [1] : vector<8x32xf32> to vector<8xf32>
    %134 = vector.shape_cast %133 : vector<8xf32> to vector<8x1xf32>
    %cst_52 = arith.constant 3.200000e+01 : f32
    %135 = vector.broadcast %cst_52 : f32 to vector<8x1xf32>
    %136 = arith.divf %134, %135 : vector<8x1xf32>
    %137 = vector.broadcast %129 : vector<8x1xf32> to vector<8x32xf32>
    %138 = arith.subf %125, %137 : vector<8x32xf32>
    %cst_53 = arith.constant 9.99999996E-13 : f32
    %139 = vector.broadcast %cst_53 : f32 to vector<8x1xf32>
    %140 = arith.addf %136, %139 : vector<8x1xf32>
    %141 = math.rsqrt %140 : vector<8x1xf32>
    %142 = vector.broadcast %141 : vector<8x1xf32> to vector<8x32xf32>
    %143 = arith.mulf %138, %142 : vector<8x32xf32>
    %144 = vector.broadcast %9 : vector<1x32xf32> to vector<8x32xf32>
    %145 = arith.mulf %143, %144 : vector<8x32xf32>
    %146 = vector.broadcast %10 : vector<1x32xf32> to vector<8x32xf32>
    %147 = arith.addf %145, %146 : vector<8x32xf32>
    %c0_54 = arith.constant 0 : index
    %c0_55 = arith.constant 0 : index
    %c0_56 = arith.constant 0 : index
    %148 = vector.load %arg9[%c0_54, %c0_55, %c0_56] : memref<1x8x32xf32, #tpu.memory_space<vmem>>, vector<1x8x32xf32>
    %149 = vector.shape_cast %148 : vector<1x8x32xf32> to vector<8x32xf32>
    %150 = vector.shape_cast %147 : vector<8x32xf32> to vector<1x8x32xf32>
    tpu.vector_store %arg9[%c0_54, %c0_55, %c0_56], %150 {strides = array<i32>} : memref<1x8x32xf32, #tpu.memory_space<vmem>>, vector<1x8x32xf32>,
    return
  }
  func.func @transform_0(%arg0: i32) -> (i32, i32, i32) {
    %c0_i32 = arith.constant 0 : i32
    %c0_i32_0 = arith.constant 0 : i32
    %c0_i32_1 = arith.constant 0 : i32
    return %arg0, %c0_i32, %c0_i32_0 : i32, i32, i32
  }
  func.func @transform_1(%arg0: i32) -> (i32, i32, i32) {
    %c0_i32 = arith.constant 0 : i32
    %c0_i32_0 = arith.constant 0 : i32
    %c0_i32_1 = arith.constant 0 : i32
    return %arg0, %c0_i32, %c0_i32_0 : i32, i32, i32
  }
  func.func @transform_2(%arg0: i32) -> (i32, i32) {
    %c0_i32 = arith.constant 0 : i32
    %c0_i32_0 = arith.constant 0 : i32
    %c0_i32_1 = arith.constant 0 : i32
    return %c0_i32, %c0_i32_0 : i32, i32
  }
  func.func @transform_3(%arg0: i32) -> (i32, i32) {
    %c0_i32 = arith.constant 0 : i32
    %c0_i32_0 = arith.constant 0 : i32
    %c0_i32_1 = arith.constant 0 : i32
    return %c0_i32, %c0_i32_0 : i32, i32
  }
  func.func @transform_4(%arg0: i32) -> (i32, i32) {
    %c0_i32 = arith.constant 0 : i32
    %c0_i32_0 = arith.constant 0 : i32
    %c0_i32_1 = arith.constant 0 : i32
    return %c0_i32, %c0_i32_0 : i32, i32
  }
  func.func @transform_5(%arg0: i32) -> (i32, i32) {
    %c0_i32 = arith.constant 0 : i32
    %c0_i32_0 = arith.constant 0 : i32
    %c0_i32_1 = arith.constant 0 : i32
    return %c0_i32, %c0_i32_0 : i32, i32
  }
  func.func @transform_6(%arg0: i32) -> (i32, i32) {
    %c0_i32 = arith.constant 0 : i32
    %c0_i32_0 = arith.constant 0 : i32
    %c0_i32_1 = arith.constant 0 : i32
    return %c0_i32, %c0_i32_0 : i32, i32
  }
  func.func @transform_7(%arg0: i32) -> (i32, i32) {
    %c0_i32 = arith.constant 0 : i32
    %c0_i32_0 = arith.constant 0 : i32
    %c0_i32_1 = arith.constant 0 : i32
    return %c0_i32, %c0_i32_0 : i32, i32
  }
  func.func @transform_8(%arg0: i32) -> (i32, i32, i32) {
    %c0_i32 = arith.constant 0 : i32
    %c0_i32_0 = arith.constant 0 : i32
    %c0_i32_1 = arith.constant 0 : i32
    return %arg0, %c0_i32, %c0_i32_0 : i32, i32, i32
  }
}

</mosaic_0001>

<llo_original>
// kernel: graph_layer.1
$region0: #{graph_layer.1}
  #allocation0 [shape = 'u32[]', space=smem, size = 0x4, offset = 0x4, fixed_abs, tag = 'smem constant byte address 0x4 - core index']
  #allocation1 [shape = 'u32[144,128]{1,0:T(1,128)}', space=vmem, size = 0x12000, scoped, tag = 'internal scratch']
  %s0 = inlined_call_operand.vmem [shape: f32[2,8,32], index: 0, kind: input, shape index: {}]
  %s1 = inlined_call_operand.vmem [shape: f32[2,8,8], index: 1, kind: input, shape index: {}]
  %s2 = inlined_call_operand.vmem [shape: f32[32,96], index: 2, kind: input, shape index: {}]
  %s3 = inlined_call_operand.vmem [shape: f32[32,96], index: 3, kind: input, shape index: {}]
  %s4 = inlined_call_operand.vmem [shape: f32[64,32], index: 4, kind: input, shape index: {}]
  %s5 = inlined_call_operand.vmem [shape: f32[1,96], index: 5, kind: input, shape index: {}]
  %s6 = inlined_call_operand.vmem [shape: f32[8,32], index: 6, kind: input, shape index: {}]
  %s7 = inlined_call_operand.vmem [shape: f32[1,64], index: 7, kind: input, shape index: {}]
  %s8 = inlined_call_operand.hbm [shape: f32[2,8,32], index: 8, kind: output, shape index: {}]
  %s9 = sld [smem:[#allocation0]]
  $region65: #{graph_layer.1} parent=0
    _
  %s11 = ssub.s32 1, %s9
  %s12 = scalar_select 0, %s11, %s9
  $region1: #{graph_layer.1} parent=0
    #allocation2 [shape = 'u8[8192]{0}', space=vmem, size = 0x2000, scoped, tag = 'output window, operand 0']
    #allocation3 [shape = 's32[2]{0}', space=sflag, size = 0x8, scoped, tag = 'scoped memory for graph_layer.1']
    %13 = vsyncpa [#allocation3], 0
    %s14 = scalar_lea.sflag [#allocation3], 1
    %15 = vsyncpa %s14, 0
    loop: start=0, step=1, limit=4
    $region2: #{graph_layer.1} parent=1 // loop_pre_header
      _
    $region3: #{graph_layer.1} parent=1 // loop_header
      %s17 = sphi 0, %s21
      %p18 = scmp.ge.s32.totalorder %s17, 4
      %s27 = sphi 0, %s29
      %s30 = sphi 0, %s27
      %s31 = sphi 0, %s30
      %s47 = sphi 0, %s31
      %s53 = sphi 0, %s55
      %s56 = sphi 0, %s53
      %s57 = sphi 0, %s56
      %s73 = sphi 0, %s57
      %s77 = sphi 0, %s77
      %s79 = sphi 0, %s77
      %s80 = sphi 0, %s79
      %s94 = sphi 0, %s80
      %s98 = sphi 0, %s98
      %s100 = sphi 0, %s98
      %s101 = sphi 0, %s100
      %s115 = sphi 0, %s101
      %s119 = sphi 0, %s119
      %s121 = sphi 0, %s119
      %s122 = sphi 0, %s121
      %s136 = sphi 0, %s122
      %s140 = sphi 0, %s140
      %s142 = sphi 0, %s140
      %s143 = sphi 0, %s142
      %s157 = sphi 0, %s143
      %s161 = sphi 0, %s161
      %s163 = sphi 0, %s161
      %s164 = sphi 0, %s163
      %s178 = sphi 0, %s164
      %s182 = sphi 0, %s182
      %s184 = sphi 0, %s182
      %s185 = sphi 0, %s184
      %s199 = sphi 0, %s185
      %s205 = sphi 0, %s207
      %s208 = sphi 0, %s205
      %s209 = sphi 0, %s208
      %s225 = sphi 0, %s209
    $region4: #{graph_layer.1} parent=1 // loop_header_branch
      %20 = sbr.rel (%p18) target = $region8
    $region5: #{graph_layer.1} parent=1 // loop_body
      %s22 = ssub.s32 %s17, 1
      %s23 = ssub.s32 %s17, 2
      %s24 = sadd.s32 %s17, 1
      %s25 = ssub.s32 %s17, %s24
      %p26 = scmp.eq.s32.totalorder %s25, 0
      %s28 = sadd.s32 %s27, 1
      %s29 = scalar_select %p26, %s27, %s28
      %p32 = pneg %p26
      %p33 = scmp.eq.s32.totalorder %s17, 1
      %p34 = por %p32, %p33
      %p35 = scmp.ne.s32.totalorder %s27, %s30
      %p36 = scmp.eq.s32.totalorder %s17, 0
      %p37 = por %p35, %p36
      %p38 = scmp.ne.s32.totalorder %s27, %s30
      %p39 = scmp.eq.s32.totalorder %s22, 1
      %p40 = por %p38, %p39
      %p41 = scmp.ne.s32.totalorder %s30, %s31
      %p42 = scmp.eq.s32.totalorder %s22, 0
      %p43 = por %p41, %p42
      %p44 = scmp.ne.s32.totalorder %s30, %s31
      %p45 = scmp.eq.s32.totalorder %s23, 1
      %p46 = por %p44, %p45
      %p48 = scmp.ne.s32.totalorder %s31, %s47
      %p49 = scmp.eq.s32.totalorder %s23, 0
      %p50 = por %p48, %p49
      %s51 = ssub.s32 %s17, %s24
      %p52 = scmp.eq.s32.totalorder %s51, 0
      %s54 = sadd.s32 %s53, 1
      %s55 = scalar_select %p52, %s53, %s54
      %p58 = pneg %p52
      %p59 = scmp.eq.s32.totalorder %s17, 1
      %p60 = por %p58, %p59
      %p61 = scmp.ne.s32.totalorder %s53, %s56
      %p62 = scmp.eq.s32.totalorder %s17, 0
      %p63 = por %p61, %p62
      %p64 = scmp.ne.s32.totalorder %s53, %s56
      %p65 = scmp.eq.s32.totalorder %s22, 1
      %p66 = por %p64, %p65
      %p67 = scmp.ne.s32.totalorder %s56, %s57
      %p68 = scmp.eq.s32.totalorder %s22, 0
      %p69 = por %p67, %p68
      %p70 = scmp.ne.s32.totalorder %s56, %s57
      %p71 = scmp.eq.s32.totalorder %s23, 1
      %p72 = por %p70, %p71
      %p74 = scmp.ne.s32.totalorder %s57, %s73
      %p75 = scmp.eq.s32.totalorder %s23, 0
      %p76 = por %p74, %p75
      %s78 = sadd.s32 %s77, 1
      %p81 = scmp.eq.s32.totalorder %s17, 1
      %p82 = scmp.ne.s32.totalorder %s77, %s79
      %p83 = scmp.eq.s32.totalorder %s17, 0
      %p84 = por %p82, %p83
      %p85 = scmp.ne.s32.totalorder %s77, %s79
      %p86 = scmp.eq.s32.totalorder %s22, 1
      %p87 = por %p85, %p86
      %p88 = scmp.ne.s32.totalorder %s79, %s80
      %p89 = scmp.eq.s32.totalorder %s22, 0
      %p90 = por %p88, %p89
      %p91 = scmp.ne.s32.totalorder %s79, %s80
      %p92 = scmp.eq.s32.totalorder %s23, 1
      %p93 = por %p91, %p92
      %p95 = scmp.ne.s32.totalorder %s80, %s94
      %p96 = scmp.eq.s32.totalorder %s23, 0
      %p97 = por %p95, %p96
      %s99 = sadd.s32 %s98, 1
      %p102 = scmp.eq.s32.totalorder %s17, 1
      %p103 = scmp.ne.s32.totalorder %s98, %s100
      %p104 = scmp.eq.s32.totalorder %s17, 0
      %p105 = por %p103, %p104
      %p106 = scmp.ne.s32.totalorder %s98, %s100
      %p107 = scmp.eq.s32.totalorder %s22, 1
      %p108 = por %p106, %p107
      %p109 = scmp.ne.s32.totalorder %s100, %s101
      %p110 = scmp.eq.s32.totalorder %s22, 0
      %p111 = por %p109, %p110
      %p112 = scmp.ne.s32.totalorder %s100, %s101
      %p113 = scmp.eq.s32.totalorder %s23, 1
      %p114 = por %p112, %p113
      %p116 = scmp.ne.s32.totalorder %s101, %s115
      %p117 = scmp.eq.s32.totalorder %s23, 0
      %p118 = por %p116, %p117
      %s120 = sadd.s32 %s119, 1
      %p123 = scmp.eq.s32.totalorder %s17, 1
      %p124 = scmp.ne.s32.totalorder %s119, %s121
      %p125 = scmp.eq.s32.totalorder %s17, 0
      %p126 = por %p124, %p125
      %p127 = scmp.ne.s32.totalorder %s119, %s121
      %p128 = scmp.eq.s32.totalorder %s22, 1
      %p129 = por %p127, %p128
      %p130 = scmp.ne.s32.totalorder %s121, %s122
      %p131 = scmp.eq.s32.totalorder %s22, 0
      %p132 = por %p130, %p131
      %p133 = scmp.ne.s32.totalorder %s121, %s122
      %p134 = scmp.eq.s32.totalorder %s23, 1
      %p135 = por %p133, %p134
      %p137 = scmp.ne.s32.totalorder %s122, %s136
      %p138 = scmp.eq.s32.totalorder %s23, 0
      %p139 = por %p137, %p138
      %s141 = sadd.s32 %s140, 1
      %p144 = scmp.eq.s32.totalorder %s17, 1
      %p145 = scmp.ne.s32.totalorder %s140, %s142
      %p146 = scmp.eq.s32.totalorder %s17, 0
      %p147 = por %p145, %p146
      %p148 = scmp.ne.s32.totalorder %s140, %s142
      %p149 = scmp.eq.s32.totalorder %s22, 1
      %p150 = por %p148, %p149
      %p151 = scmp.ne.s32.totalorder %s142, %s143
      %p152 = scmp.eq.s32.totalorder %s22, 0
      %p153 = por %p151, %p152
      %p154 = scmp.ne.s32.totalorder %s142, %s143
      %p155 = scmp.eq.s32.totalorder %s23, 1
      %p156 = por %p154, %p155
      %p158 = scmp.ne.s32.totalorder %s143, %s157
      %p159 = scmp.eq.s32.totalorder %s23, 0
      %p160 = por %p158, %p159
      %s162 = sadd.s32 %s161, 1
      %p165 = scmp.eq.s32.totalorder %s17, 1
      %p166 = scmp.ne.s32.totalorder %s161, %s163
      %p167 = scmp.eq.s32.totalorder %s17, 0
      %p168 = por %p166, %p167
      %p169 = scmp.ne.s32.totalorder %s161, %s163
      %p170 = scmp.eq.s32.totalorder %s22, 1
      %p171 = por %p169, %p170
      %p172 = scmp.ne.s32.totalorder %s163, %s164
      %p173 = scmp.eq.s32.totalorder %s22, 0
      %p174 = por %p172, %p173
      %p175 = scmp.ne.s32.totalorder %s163, %s164
      %p176 = scmp.eq.s32.totalorder %s23, 1
      %p177 = por %p175, %p176
      %p179 = scmp.ne.s32.totalorder %s164, %s178
      %p180 = scmp.eq.s32.totalorder %s23, 0
      %p181 = por %p179, %p180
      %s183 = sadd.s32 %s182, 1
      %p186 = scmp.eq.s32.totalorder %s17, 1
      %p187 = scmp.ne.s32.totalorder %s182, %s184
      %p188 = scmp.eq.s32.totalorder %s17, 0
      %p189 = por %p187, %p188
      %p190 = scmp.ne.s32.totalorder %s182, %s184
      %p191 = scmp.eq.s32.totalorder %s22, 1
      %p192 = por %p190, %p191
      %p193 = scmp.ne.s32.totalorder %s184, %s185
      %p194 = scmp.eq.s32.totalorder %s22, 0
      %p195 = por %p193, %p194
      %p196 = scmp.ne.s32.totalorder %s184, %s185
      %p197 = scmp.eq.s32.totalorder %s23, 1
      %p198 = por %p196, %p197
      %p200 = scmp.ne.s32.totalorder %s185, %s199
      %p201 = scmp.eq.s32.totalorder %s23, 0
      %p202 = por %p200, %p201
      %s203 = ssub.s32 %s17, %s24
      %p204 = scmp.eq.s32.totalorder %s203, 0
      %s206 = sadd.s32 %s205, 1
      %s207 = scalar_select %p204, %s205, %s206
      %p210 = pneg %p204
      %p211 = scmp.eq.s32.totalorder %s17, 1
      %p212 = por %p210, %p211
      %p213 = scmp.ne.s32.totalorder %s205, %s208
      %p214 = scmp.eq.s32.totalorder %s17, 0
      %p215 = por %p213, %p214
      %p216 = scmp.ne.s32.totalorder %s205, %s208
      %p217 = scmp.eq.s32.totalorder %s22, 1
      %p218 = por %p216, %p217
      %p219 = scmp.ne.s32.totalorder %s208, %s209
      %p220 = scmp.eq.s32.totalorder %s22, 0
      %p221 = por %p219, %p220
      %p222 = scmp.ne.s32.totalorder %s208, %s209
      %p223 = scmp.eq.s32.totalorder %s23, 1
      %p224 = por %p222, %p223
      %p226 = scmp.ne.s32.totalorder %s209, %s225
      %p227 = scmp.eq.s32.totalorder %s23, 0
      %p228 = por %p226, %p227
      %p229 = scmp.le.s32.totalorder 1, %s17
      %p230 = scmp.lt.s32.totalorder %s17, 3
      %p231 = pnand %p229, %p230
      %p232 = pneg %p231
      // Predicated region
      $region9: #{graph_layer.1} parent=5 // pred_check
        _
      $region10: #{graph_layer.1} parent=5 // pred_check_branch
        %234 = sbr.rel (%p231) target = $region12
      $region11: #{graph_layer.1} parent=5 // pred_region
        %s235 = ssub.s32 %s17, 1
        // Predicated region
        $region13: #{graph_layer.1} parent=11 // pred_check
          %p236 = pneg %p90
        $region14: #{graph_layer.1} parent=11 // pred_check_branch
          %238 = sbr.rel (%p236) target = $region16
        $region15: #{graph_layer.1} parent=11 // pred_region
          _
        $region16: #{graph_layer.1} parent=11 // pred_fallthru
          _
        // Predicated region
        $region17: #{graph_layer.1} parent=11 // pred_check
          %p239 = pneg %p111
        $region18: #{graph_layer.1} parent=11 // pred_check_branch
          %241 = sbr.rel (%p239) target = $region20
        $region19: #{graph_layer.1} parent=11 // pred_region
          _
        $region20: #{graph_layer.1} parent=11 // pred_fallthru
          _
        // Predicated region
        $region21: #{graph_layer.1} parent=11 // pred_check
          %p242 = pneg %p132
        $region22: #{graph_layer.1} parent=11 // pred_check_branch
          %244 = sbr.rel (%p242) target = $region24
        $region23: #{graph_layer.1} parent=11 // pred_region
          _
        $region24: #{graph_layer.1} parent=11 // pred_fallthru
          _
        // Predicated region
        $region25: #{graph_layer.1} parent=11 // pred_check
          %p245 = pneg %p153
        $region26: #{graph_layer.1} parent=11 // pred_check_branch
          %247 = sbr.rel (%p245) target = $region28
        $region27: #{graph_layer.1} parent=11 // pred_region
          _
        $region28: #{graph_layer.1} parent=11 // pred_fallthru
          _
        // Predicated region
        $region29: #{graph_layer.1} parent=11 // pred_check
          %p248 = pneg %p174
        $region30: #{graph_layer.1} parent=11 // pred_check_branch
          %250 = sbr.rel (%p248) target = $region32
        $region31: #{graph_layer.1} parent=11 // pred_region
          _
        $region32: #{graph_layer.1} parent=11 // pred_fallthru
          _
        // Predicated region
        $region33: #{graph_layer.1} parent=11 // pred_check
          %p251 = pneg %p195
        $region34: #{graph_layer.1} parent=11 // pred_check_branch
          %253 = sbr.rel (%p251) target = $region36
        $region35: #{graph_layer.1} parent=11 // pred_region
          _
        $region36: #{graph_layer.1} parent=11 // pred_fallthru
          _
      $region12: #{graph_layer.1} parent=5 // pred_fallthru
        _
      %p254 = scmp.lt.s32.totalorder %s17, 2
      // Predicated region
      $region37: #{graph_layer.1} parent=5 // pred_check
        %p255 = pneg %p254
      $region38: #{graph_layer.1} parent=5 // pred_check_branch
        %257 = sbr.rel (%p255) target = $region40
      $region39: #{graph_layer.1} parent=5 // pred_region
        // Predicated region
        $region41: #{graph_layer.1} parent=39 // pred_check
          %p258 = pneg %p37
        $region42: #{graph_layer.1} parent=39 // pred_check_branch
          %260 = sbr.rel (%p258) target = $region44
        $region43: #{graph_layer.1} parent=39 // pred_region
          %p261 = scmp.lt.s32.totalorder %s17, 1
          %s262 = scalar_select %p261, %s17, 1
          %s263 = smul.addr %s262, 8
          %s264 = scalar_lea.vmem %s0, %s263
        $region44: #{graph_layer.1} parent=39 // pred_fallthru
          _
        // Predicated region
        $region45: #{graph_layer.1} parent=39 // pred_check
          %p265 = pneg %p63
        $region46: #{graph_layer.1} parent=39 // pred_check_branch
          %267 = sbr.rel (%p265) target = $region48
        $region47: #{graph_layer.1} parent=39 // pred_region
          %p268 = scmp.lt.s32.totalorder %s17, 1
          %s269 = scalar_select %p268, %s17, 1
          %s270 = smul.addr %s269, 8
          %s271 = scalar_lea.vmem %s1, %s270
        $region48: #{graph_layer.1} parent=39 // pred_fallthru
          _
      $region40: #{graph_layer.1} parent=5 // pred_fallthru
        _
      %p272 = scmp.le.s32.totalorder 1, %s17
      %p273 = scmp.lt.s32.totalorder %s17, 3
      %p274 = pnand %p272, %p273
      %p275 = pneg %p274
      // Predicated region
      $region49: #{graph_layer.1} parent=5 // pred_check
        _
      $region50: #{graph_layer.1} parent=5 // pred_check_branch
        %277 = sbr.rel (%p274) target = $region52
      $region51: #{graph_layer.1} parent=5 // pred_region
        %s278 = ssub.s32 %s17, 1
        %p279 = scmp.lt.s32.totalorder %s22, 1
        %s280 = scalar_select %p279, %s22, 1
        %s281 = smul.addr %s280, 8
        %s282 = scalar_lea.vmem %s0, %s281
        %p283 = pneg %p43
        %p284 = pneg %p40
        %p285 = scmp.lt.s32.totalorder %s22, 1
        %s286 = scalar_select %p285, %s22, 1
        %s287 = smul.addr %s286, 8
        %s288 = scalar_lea.vmem %s1, %s287
        %p289 = pneg %p69
        %p290 = pneg %p66
        %p291 = pneg %p90
        %p292 = pneg %p87
        %p293 = pneg %p111
        %p294 = pneg %p108
        %p295 = pneg %p132
        %p296 = pneg %p129
        %p297 = pneg %p153
        %p298 = pneg %p150
        %p299 = pneg %p174
        %p300 = pneg %p171
        %p301 = pneg %p195
        %p302 = pneg %p192
        %p303 = pneg %p221
        %p304 = pneg %p218
        %s305 = sand.u32 %s208, 1
        %s306 = scalar_lea.sflag [#allocation3], %s305
        %s307 = sand.u32 %s208, 1
        %s308 = smul.addr %s307, 8
        %s309 = scalar_lea.vmem [#allocation2], %s308
        %p310 = scmp.lt.s32.totalorder %s22, 1
        %s311 = scalar_select %p310, %s22, 1
        %s312 = smul.addr %s311, 8
        %s313 = scalar_lea.vmem %s0, %s312
        %p314 = scmp.lt.s32.totalorder %s22, 1
        %s315 = scalar_select %p314, %s22, 1
        %s316 = smul.addr %s315, 8
        %s317 = scalar_lea.vmem %s1, %s316
        %v318 = vld [vmem:[%s313] sm:$0xff]
        %v319 = vld [vmem:[%s317] sm:$0xff]
        %v320 = vld [vmem:[%s5] sm:$0x1]
        %v321 = vld [vmem:[%s6] sm:$0x1]
        %v322 = vld [vmem:[%s6 + $0x1] sm:$0x1]
        %v323 = vld [vmem:[%s6 + $0x2] sm:$0x1]
        %v324 = vld [vmem:[%s6 + $0x3] sm:$0x1]
        %v325 = vld [vmem:[%s6 + $0x4] sm:$0x1]
        %v326 = vld [vmem:[%s6 + $0x5] sm:$0x1]
        %v327 = vld [vmem:[%s7] sm:$0x1]
        %v328 = vld [vmem:[%s2] sm:$0xff]
        %v329 = vld [vmem:[%s2 + $0x8] sm:$0xff]
        %v330 = vld [vmem:[%s2 + $0x10] sm:$0xff]
        %v331 = vld [vmem:[%s2 + $0x18] sm:$0xff]
        %v333 = vlaneseq
        %v334 = vshrl.u32 %v333, 7
        %v335 = vsub.s32 0, %v334
        %v336 = vrot.slane %v320, %v335
        %vm338 = vcmask 261120
        %v340 = vsel %vm338, %v318, 0
        %342 = vmatprep.subr.mxu0 0.0
        %343 = vmatpush1.msra.mxu0 %v328
        %344 = vmatprep.subr.mxu0 0.0
        %345 = vmatpush1.msra.mxu0 %v329
        %346 = vmatprep.subr.mxu0 0.0
        %347 = vmatpush1.msra.mxu0 %v330
        %348 = vmatprep.subr.mxu0 0.0
        %349 = vmatpush1.msra.mxu0 %v331
        %350 = vmatprep.subr.mxu0 0.0
        %351 = vmatpush1.msra.mxu0 0.0
        %352 = vmatprep.subr.mxu0 0.0
        %353 = vmatpush1.msra.mxu0 0.0
        %354 = vmatprep.subr.mxu0 0.0
        %355 = vmatpush1.msra.mxu0 0.0
        %356 = vmatprep.subr.mxu0 0.0
        %357 = vmatpush1.msra.mxu0 0.0
        %358 = vmatprep.subr.mxu0 0.0
        %359 = vmatpush1.msra.mxu0 0.0
        %360 = vmatprep.subr.mxu0 0.0
        %361 = vmatpush1.msra.mxu0 0.0
        %362 = vmatprep.subr.mxu0 0.0
        %363 = vmatpush1.msra.mxu0 0.0
        %364 = vmatprep.subr.mxu0 0.0
        %365 = vmatpush1.msra.mxu0 0.0
        %366 = vmatprep.subr.mxu0 0.0
        %367 = vmatpush1.msra.mxu0 0.0
        %368 = vmatprep.subr.mxu0 0.0
        %369 = vmatpush1.msra.mxu0 0.0
        %370 = vmatprep.subr.mxu0 0.0
        %371 = vmatpush1.msra.mxu0 0.0
        %372 = vmatprep.subr.mxu0 0.0
        %373 = vmatpush1.msra.mxu0 0.0
        %374 = vmatprep.subr.mxu0 0.0
        %375 = vmatpush1.msra.mxu0 0.0
        %376 = vmatprep.subr.mxu0 0.0
        %377 = vmatpush1.msra.mxu0 0.0
        %378 = vmatprep.subr.mxu0 0.0
        %379 = vmatpush1.msra.mxu0 0.0
        %380 = vmatprep.subr.mxu0 0.0
        %381 = vmatpush1.msra.mxu0 0.0
        %382 = vmatprep.subr.mxu0 0.0
        %383 = vmatpush1.msra.mxu0 0.0
        %384 = vmatprep.subr.mxu0 0.0
        %385 = vmatpush1.msra.mxu0 0.0
        %386 = vmatprep.subr.mxu0 0.0
        %387 = vmatpush1.msra.mxu0 0.0
        %388 = vmatprep.subr.mxu0 0.0
        %389 = vmatpush1.msra.mxu0 0.0
        %390 = vmatprep.subr.mxu0 0.0
        %391 = vmatpush1.msra.mxu0 0.0
        %392 = vmatprep.subr.mxu0 0.0
        %393 = vmatpush1.msra.mxu0 0.0
        %394 = vmatprep.subr.mxu0 0.0
        %395 = vmatpush1.msra.mxu0 0.0
        %396 = vmatprep.subr.mxu0 0.0
        %397 = vmatpush1.msra.mxu0 0.0
        %398 = vmatprep.subr.mxu0 0.0
        %399 = vmatpush1.msra.mxu0 0.0
        %400 = vmatprep.subr.mxu0 0.0
        %401 = vmatpush1.msra.mxu0 0.0
        %402 = vmatprep.subr.mxu0 0.0
        %403 = vmatpush1.msra.mxu0 0.0
        %404 = vmatprep.subr.mxu0 0.0
        %405 = vmatpush1.msra.mxu0 0.0
        %406 = vmatprep.mubr.f32.mxu0 0.0
        %407 = vmatmul.mubr.f32.gmra.mrb[0].mxu0 %v340
        %v408 = vpop.f32.mrb[0].mxu0
        %v409 = vadd.f32 %v336, %v408
        %v410 = vpop.f32.mrb[0].mxu0
        %411 = vdwg.mxu0
        %413 = vrot.lane.b32.xlu0 %v409, 96
        %v414 = vpop.permute.xlu0 %413
        %vm415 = vcmask 64512
        %v416 = vsel %vm415, %v409, 0
        %v418 = vsel %vm415, %v414, 0
        %420 = vmatprep.subr.mxu0 0.0
        %421 = vmatpush1.xpose.msra.mxu0 %v418
        %422 = vmatprep.subr.mxu0 0.0
        %423 = vmatpush1.xpose.msra.mxu0 0.0
        %424 = vmatprep.subr.mxu0 0.0
        %425 = vmatpush1.xpose.msra.mxu0 0.0
        %426 = vmatprep.subr.mxu0 0.0
        %427 = vmatpush1.xpose.msra.mxu0 0.0
        %428 = vmatprep.subr.mxu0 0.0
        %429 = vmatpush1.xpose.msra.mxu0 0.0
        %430 = vmatprep.subr.mxu0 0.0
        %431 = vmatpush1.xpose.msra.mxu0 0.0
        %432 = vmatprep.subr.mxu0 0.0
        %433 = vmatpush1.xpose.msra.mxu0 0.0
        %434 = vmatprep.subr.mxu0 0.0
        %435 = vmatpush1.xpose.msra.mxu0 0.0
        %436 = vmatprep.subr.mxu0 0.0
        %437 = vmatpush1.xpose.msra.mxu0 0.0
        %438 = vmatprep.subr.mxu0 0.0
        %439 = vmatpush1.xpose.msra.mxu0 0.0
        %440 = vmatprep.subr.mxu0 0.0
        %441 = vmatpush1.xpose.msra.mxu0 0.0
        %442 = vmatprep.subr.mxu0 0.0
        %443 = vmatpush1.xpose.msra.mxu0 0.0
        %444 = vmatprep.subr.mxu0 0.0
        %445 = vmatpush1.xpose.msra.mxu0 0.0
        %446 = vmatprep.subr.mxu0 0.0
        %447 = vmatpush1.xpose.msra.mxu0 0.0
        %448 = vmatprep.subr.mxu0 0.0
        %449 = vmatpush1.xpose.msra.mxu0 0.0
        %450 = vmatprep.subr.mxu0 0.0
        %451 = vmatpush1.xpose.msra.mxu0 0.0
        %452 = vmatprep.subr.mxu0 0.0
        %453 = vmatpush1.xpose.msra.mxu0 0.0
        %454 = vmatprep.subr.mxu0 0.0
        %455 = vmatpush1.xpose.msra.mxu0 0.0
        %456 = vmatprep.subr.mxu0 0.0
        %457 = vmatpush1.xpose.msra.mxu0 0.0
        %458 = vmatprep.subr.mxu0 0.0
        %459 = vmatpush1.xpose.msra.mxu0 0.0
        %460 = vmatprep.subr.mxu0 0.0
        %461 = vmatpush1.xpose.msra.mxu0 0.0
        %462 = vmatprep.subr.mxu0 0.0
        %463 = vmatpush1.xpose.msra.mxu0 0.0
        %464 = vmatprep.subr.mxu0 0.0
        %465 = vmatpush1.xpose.msra.mxu0 0.0
        %466 = vmatprep.subr.mxu0 0.0
        %467 = vmatpush1.xpose.msra.mxu0 0.0
        %468 = vmatprep.subr.mxu0 0.0
        %469 = vmatpush1.xpose.msra.mxu0 0.0
        %470 = vmatprep.subr.mxu0 0.0
        %471 = vmatpush1.xpose.msra.mxu0 0.0
        %472 = vmatprep.subr.mxu0 0.0
        %473 = vmatpush1.xpose.msra.mxu0 0.0
        %474 = vmatprep.subr.mxu0 0.0
        %475 = vmatpush1.xpose.msra.mxu0 0.0
        %476 = vmatprep.subr.mxu0 0.0
        %477 = vmatpush1.xpose.msra.mxu0 0.0
        %478 = vmatprep.subr.mxu0 0.0
        %479 = vmatpush1.xpose.msra.mxu0 0.0
        %480 = vmatprep.subr.mxu0 0.0
        %481 = vmatpush1.xpose.msra.mxu0 0.0
        %482 = vmatprep.subr.mxu0 0.0
        %483 = vmatpush1.xpose.msra.mxu0 0.0
        %484 = vmatprep.mubr.f32.mxu0 0.0
        %485 = vmatmul.mubr.f32.gmra.mrb[0].mxu0 %v416
        %v486 = vpop.f32.mrb[0].mxu0
        %v487 = vadd.f32 %v319, %v486
        %v488 = vpop.f32.mrb[0].mxu0
        %489 = vdwg.mxu0
        %v490 = vsel %vm415, %v487, -inf
        %491 = vmax.xlane.f32.xlu0 %v490
        %v492 = vpop.xlane.xlu0 %491
        %v493 = vsub.f32 %v487, %v492
        %v494 = vmul.f32 %v493, 1.442695
        %v495 = vpow.pop %v494
        %v496 = vsel %vm415, %v495, 0.0
        %497 = vadd.xlane.f32.xlu0 %v496
        %v498 = vpop.xlane.xlu0 %497
        %v499 = vrcp.pop %v498
        %v500 = vmul.f32 %v495, %v499
        %501 = vrot.lane.b32.xlu0 %v409, 64
        %v502 = vpop.permute.xlu0 %501
        %v505 = vsel %vm415, %v500, 0
        %507 = vmatprep.subr.mxu0 0.0
        %508 = vmatpush1.msra.mxu0 %v502
        %509 = vmatprep.subr.mxu0 0.0
        %510 = vmatpush1.msra.mxu0 0.0
        %511 = vmatprep.subr.mxu0 0.0
        %512 = vmatpush1.msra.mxu0 0.0
        %513 = vmatprep.subr.mxu0 0.0
        %514 = vmatpush1.msra.mxu0 0.0
        %515 = vmatprep.subr.mxu0 0.0
        %516 = vmatpush1.msra.mxu0 0.0
        %517 = vmatprep.subr.mxu0 0.0
        %518 = vmatpush1.msra.mxu0 0.0
        %519 = vmatprep.subr.mxu0 0.0
        %520 = vmatpush1.msra.mxu0 0.0
        %521 = vmatprep.subr.mxu0 0.0
        %522 = vmatpush1.msra.mxu0 0.0
        %523 = vmatprep.subr.mxu0 0.0
        %524 = vmatpush1.msra.mxu0 0.0
        %525 = vmatprep.subr.mxu0 0.0
        %526 = vmatpush1.msra.mxu0 0.0
        %527 = vmatprep.subr.mxu0 0.0
        %528 = vmatpush1.msra.mxu0 0.0
        %529 = vmatprep.subr.mxu0 0.0
        %530 = vmatpush1.msra.mxu0 0.0
        %531 = vmatprep.subr.mxu0 0.0
        %532 = vmatpush1.msra.mxu0 0.0
        %533 = vmatprep.subr.mxu0 0.0
        %534 = vmatpush1.msra.mxu0 0.0
        %535 = vmatprep.subr.mxu0 0.0
        %536 = vmatpush1.msra.mxu0 0.0
        %537 = vmatprep.subr.mxu0 0.0
        %538 = vmatpush1.msra.mxu0 0.0
        %539 = vmatprep.subr.mxu0 0.0
        %540 = vmatpush1.msra.mxu0 0.0
        %541 = vmatprep.subr.mxu0 0.0
        %542 = vmatpush1.msra.mxu0 0.0
        %543 = vmatprep.subr.mxu0 0.0
        %544 = vmatpush1.msra.mxu0 0.0
        %545 = vmatprep.subr.mxu0 0.0
        %546 = vmatpush1.msra.mxu0 0.0
        %547 = vmatprep.subr.mxu0 0.0
        %548 = vmatpush1.msra.mxu0 0.0
        %549 = vmatprep.subr.mxu0 0.0
        %550 = vmatpush1.msra.mxu0 0.0
        %551 = vmatprep.subr.mxu0 0.0
        %552 = vmatpush1.msra.mxu0 0.0
        %553 = vmatprep.subr.mxu0 0.0
        %554 = vmatpush1.msra.mxu0 0.0
        %555 = vmatprep.subr.mxu0 0.0
        %556 = vmatpush1.msra.mxu0 0.0
        %557 = vmatprep.subr.mxu0 0.0
        %558 = vmatpush1.msra.mxu0 0.0
        %559 = vmatprep.subr.mxu0 0.0
        %560 = vmatpush1.msra.mxu0 0.0
        %561 = vmatprep.subr.mxu0 0.0
        %562 = vmatpush1.msra.mxu0 0.0
        %563 = vmatprep.subr.mxu0 0.0
        %564 = vmatpush1.msra.mxu0 0.0
        %565 = vmatprep.subr.mxu0 0.0
        %566 = vmatpush1.msra.mxu0 0.0
        %567 = vmatprep.subr.mxu0 0.0
        %568 = vmatpush1.msra.mxu0 0.0
        %569 = vmatprep.subr.mxu0 0.0
        %570 = vmatpush1.msra.mxu0 0.0
        %571 = vmatprep.mubr.f32.mxu0 0.0
        %572 = vmatmul.mubr.f32.gmra.mrb[0].mxu0 %v505
        %v573 = vpop.f32.mrb[0].mxu0
        %v574 = vadd.f32 0.0, %v573
        %v575 = vpop.f32.mrb[0].mxu0
        %576 = vdwg.mxu0
        %577 = vrot.lane.b32.xlu0 %v409, 120
        %v578 = vpop.permute.xlu0 %577
        %579 = vrot.lane.b32.xlu0 %v409, 88
        %v580 = vpop.permute.xlu0 %579
        %v581 = vsel %vm415, %v578, 0
        %v583 = vsel %vm415, %v580, 0
        %585 = vmatprep.subr.mxu0 0.0
        %586 = vmatpush1.xpose.msra.mxu0 %v583
        %587 = vmatprep.subr.mxu0 0.0
        %588 = vmatpush1.xpose.msra.mxu0 0.0
        %589 = vmatprep.subr.mxu0 0.0
        %590 = vmatpush1.xpose.msra.mxu0 0.0
        %591 = vmatprep.subr.mxu0 0.0
        %592 = vmatpush1.xpose.msra.mxu0 0.0
        %593 = vmatprep.subr.mxu0 0.0
        %594 = vmatpush1.xpose.msra.mxu0 0.0
        %595 = vmatprep.subr.mxu0 0.0
        %596 = vmatpush1.xpose.msra.mxu0 0.0
        %597 = vmatprep.subr.mxu0 0.0
        %598 = vmatpush1.xpose.msra.mxu0 0.0
        %599 = vmatprep.subr.mxu0 0.0
        %600 = vmatpush1.xpose.msra.mxu0 0.0
        %601 = vmatprep.subr.mxu0 0.0
        %602 = vmatpush1.xpose.msra.mxu0 0.0
        %603 = vmatprep.subr.mxu0 0.0
        %604 = vmatpush1.xpose.msra.mxu0 0.0
        %605 = vmatprep.subr.mxu0 0.0
        %606 = vmatpush1.xpose.msra.mxu0 0.0
        %607 = vmatprep.subr.mxu0 0.0
        %608 = vmatpush1.xpose.msra.mxu0 0.0
        %609 = vmatprep.subr.mxu0 0.0
        %610 = vmatpush1.xpose.msra.mxu0 0.0
        %611 = vmatprep.subr.mxu0 0.0
        %612 = vmatpush1.xpose.msra.mxu0 0.0
        %613 = vmatprep.subr.mxu0 0.0
        %614 = vmatpush1.xpose.msra.mxu0 0.0
        %615 = vmatprep.subr.mxu0 0.0
        %616 = vmatpush1.xpose.msra.mxu0 0.0
        %617 = vmatprep.subr.mxu0 0.0
        %618 = vmatpush1.xpose.msra.mxu0 0.0
        %619 = vmatprep.subr.mxu0 0.0
        %620 = vmatpush1.xpose.msra.mxu0 0.0
        %621 = vmatprep.subr.mxu0 0.0
        %622 = vmatpush1.xpose.msra.mxu0 0.0
        %623 = vmatprep.subr.mxu0 0.0
        %624 = vmatpush1.xpose.msra.mxu0 0.0
        %625 = vmatprep.subr.mxu0 0.0
        %626 = vmatpush1.xpose.msra.mxu0 0.0
        %627 = vmatprep.subr.mxu0 0.0
        %628 = vmatpush1.xpose.msra.mxu0 0.0
        %629 = vmatprep.subr.mxu0 0.0
        %630 = vmatpush1.xpose.msra.mxu0 0.0
        %631 = vmatprep.subr.mxu0 0.0
        %632 = vmatpush1.xpose.msra.mxu0 0.0
        %633 = vmatprep.subr.mxu0 0.0
        %634 = vmatpush1.xpose.msra.mxu0 0.0
        %635 = vmatprep.subr.mxu0 0.0
        %636 = vmatpush1.xpose.msra.mxu0 0.0
        %637 = vmatprep.subr.mxu0 0.0
        %638 = vmatpush1.xpose.msra.mxu0 0.0
        %639 = vmatprep.subr.mxu0 0.0
        %640 = vmatpush1.xpose.msra.mxu0 0.0
        %641 = vmatprep.subr.mxu0 0.0
        %642 = vmatpush1.xpose.msra.mxu0 0.0
        %643 = vmatprep.subr.mxu0 0.0
        %644 = vmatpush1.xpose.msra.mxu0 0.0
        %645 = vmatprep.subr.mxu0 0.0
        %646 = vmatpush1.xpose.msra.mxu0 0.0
        %647 = vmatprep.subr.mxu0 0.0
        %648 = vmatpush1.xpose.msra.mxu0 0.0
        %649 = vmatprep.mubr.f32.mxu0 0.0
        %650 = vmatmul.mubr.f32.gmra.mrb[0].mxu0 %v581
        %v651 = vpop.f32.mrb[0].mxu0
        %v652 = vadd.f32 %v319, %v651
        %v653 = vpop.f32.mrb[0].mxu0
        %654 = vdwg.mxu0
        %v655 = vsel %vm415, %v652, -inf
        %656 = vmax.xlane.f32.xlu0 %v655
        %v657 = vpop.xlane.xlu0 %656
        %v658 = vsub.f32 %v652, %v657
        %v659 = vmul.f32 %v658, 1.442695
        %v660 = vpow.pop %v659
        %v661 = vsel %vm415, %v660, 0.0
        %662 = vadd.xlane.f32.xlu0 %v661
        %v663 = vpop.xlane.xlu0 %662
        %v664 = vrcp.pop %v663
        %v665 = vmul.f32 %v660, %v664
        %666 = vrot.lane.b32.xlu0 %v409, 56
        %v667 = vpop.permute.xlu0 %666
        %v670 = vsel %vm415, %v665, 0
        %672 = vmatprep.subr.mxu0 0.0
        %673 = vmatpush1.msra.mxu0 %v667
        %674 = vmatprep.subr.mxu0 0.0
        %675 = vmatpush1.msra.mxu0 0.0
        %676 = vmatprep.subr.mxu0 0.0
        %677 = vmatpush1.msra.mxu0 0.0
        %678 = vmatprep.subr.mxu0 0.0
        %679 = vmatpush1.msra.mxu0 0.0
        %680 = vmatprep.subr.mxu0 0.0
        %681 = vmatpush1.msra.mxu0 0.0
        %682 = vmatprep.subr.mxu0 0.0
        %683 = vmatpush1.msra.mxu0 0.0
        %684 = vmatprep.subr.mxu0 0.0
        %685 = vmatpush1.msra.mxu0 0.0
        %686 = vmatprep.subr.mxu0 0.0
        %687 = vmatpush1.msra.mxu0 0.0
        %688 = vmatprep.subr.mxu0 0.0
        %689 = vmatpush1.msra.mxu0 0.0
        %690 = vmatprep.subr.mxu0 0.0
        %691 = vmatpush1.msra.mxu0 0.0
        %692 = vmatprep.subr.mxu0 0.0
        %693 = vmatpush1.msra.mxu0 0.0
        %694 = vmatprep.subr.mxu0 0.0
        %695 = vmatpush1.msra.mxu0 0.0
        %696 = vmatprep.subr.mxu0 0.0
        %697 = vmatpush1.msra.mxu0 0.0
        %698 = vmatprep.subr.mxu0 0.0
        %699 = vmatpush1.msra.mxu0 0.0
        %700 = vmatprep.subr.mxu0 0.0
        %701 = vmatpush1.msra.mxu0 0.0
        %702 = vmatprep.subr.mxu0 0.0
        %703 = vmatpush1.msra.mxu0 0.0
        %704 = vmatprep.subr.mxu0 0.0
        %705 = vmatpush1.msra.mxu0 0.0
        %706 = vmatprep.subr.mxu0 0.0
        %707 = vmatpush1.msra.mxu0 0.0
        %708 = vmatprep.subr.mxu0 0.0
        %709 = vmatpush1.msra.mxu0 0.0
        %710 = vmatprep.subr.mxu0 0.0
        %711 = vmatpush1.msra.mxu0 0.0
        %712 = vmatprep.subr.mxu0 0.0
        %713 = vmatpush1.msra.mxu0 0.0
        %714 = vmatprep.subr.mxu0 0.0
        %715 = vmatpush1.msra.mxu0 0.0
        %716 = vmatprep.subr.mxu0 0.0
        %717 = vmatpush1.msra.mxu0 0.0
        %718 = vmatprep.subr.mxu0 0.0
        %719 = vmatpush1.msra.mxu0 0.0
        %720 = vmatprep.subr.mxu0 0.0
        %721 = vmatpush1.msra.mxu0 0.0
        %722 = vmatprep.subr.mxu0 0.0
        %723 = vmatpush1.msra.mxu0 0.0
        %724 = vmatprep.subr.mxu0 0.0
        %725 = vmatpush1.msra.mxu0 0.0
        %726 = vmatprep.subr.mxu0 0.0
        %727 = vmatpush1.msra.mxu0 0.0
        %728 = vmatprep.subr.mxu0 0.0
        %729 = vmatpush1.msra.mxu0 0.0
        %730 = vmatprep.subr.mxu0 0.0
        %731 = vmatpush1.msra.mxu0 0.0
        %732 = vmatprep.subr.mxu0 0.0
        %733 = vmatpush1.msra.mxu0 0.0
        %734 = vmatprep.subr.mxu0 0.0
        %735 = vmatpush1.msra.mxu0 0.0
        %736 = vmatprep.mubr.f32.mxu0 0.0
        %737 = vmatmul.mubr.f32.gmra.mrb[0].mxu0 %v670
        %v738 = vpop.f32.mrb[0].mxu0
        %v739 = vadd.f32 0.0, %v738
        %v740 = vpop.f32.mrb[0].mxu0
        %741 = vdwg.mxu0
        %742 = vrot.lane.b32.xlu0 %v409, 112
        %v743 = vpop.permute.xlu0 %742
        %744 = vrot.lane.b32.xlu0 %v409, 80
        %v745 = vpop.permute.xlu0 %744
        %v746 = vsel %vm415, %v743, 0
        %v748 = vsel %vm415, %v745, 0
        %750 = vmatprep.subr.mxu0 0.0
        %751 = vmatpush1.xpose.msra.mxu0 %v748
        %752 = vmatprep.subr.mxu0 0.0
        %753 = vmatpush1.xpose.msra.mxu0 0.0
        %754 = vmatprep.subr.mxu0 0.0
        %755 = vmatpush1.xpose.msra.mxu0 0.0
        %756 = vmatprep.subr.mxu0 0.0
        %757 = vmatpush1.xpose.msra.mxu0 0.0
        %758 = vmatprep.subr.mxu0 0.0
        %759 = vmatpush1.xpose.msra.mxu0 0.0
        %760 = vmatprep.subr.mxu0 0.0
        %761 = vmatpush1.xpose.msra.mxu0 0.0
        %762 = vmatprep.subr.mxu0 0.0
        %763 = vmatpush1.xpose.msra.mxu0 0.0
        %764 = vmatprep.subr.mxu0 0.0
        %765 = vmatpush1.xpose.msra.mxu0 0.0
        %766 = vmatprep.subr.mxu0 0.0
        %767 = vmatpush1.xpose.msra.mxu0 0.0
        %768 = vmatprep.subr.mxu0 0.0
        %769 = vmatpush1.xpose.msra.mxu0 0.0
        %770 = vmatprep.subr.mxu0 0.0
        %771 = vmatpush1.xpose.msra.mxu0 0.0
        %772 = vmatprep.subr.mxu0 0.0
        %773 = vmatpush1.xpose.msra.mxu0 0.0
        %774 = vmatprep.subr.mxu0 0.0
        %775 = vmatpush1.xpose.msra.mxu0 0.0
        %776 = vmatprep.subr.mxu0 0.0
        %777 = vmatpush1.xpose.msra.mxu0 0.0
        %778 = vmatprep.subr.mxu0 0.0
        %779 = vmatpush1.xpose.msra.mxu0 0.0
        %780 = vmatprep.subr.mxu0 0.0
        %781 = vmatpush1.xpose.msra.mxu0 0.0
        %782 = vmatprep.subr.mxu0 0.0
        %783 = vmatpush1.xpose.msra.mxu0 0.0
        %784 = vmatprep.subr.mxu0 0.0
        %785 = vmatpush1.xpose.msra.mxu0 0.0
        %786 = vmatprep.subr.mxu0 0.0
        %787 = vmatpush1.xpose.msra.mxu0 0.0
        %788 = vmatprep.subr.mxu0 0.0
        %789 = vmatpush1.xpose.msra.mxu0 0.0
        %790 = vmatprep.subr.mxu0 0.0
        %791 = vmatpush1.xpose.msra.mxu0 0.0
        %792 = vmatprep.subr.mxu0 0.0
        %793 = vmatpush1.xpose.msra.mxu0 0.0
        %794 = vmatprep.subr.mxu0 0.0
        %795 = vmatpush1.xpose.msra.mxu0 0.0
        %796 = vmatprep.subr.mxu0 0.0
        %797 = vmatpush1.xpose.msra.mxu0 0.0
        %798 = vmatprep.subr.mxu0 0.0
        %799 = vmatpush1.xpose.msra.mxu0 0.0
        %800 = vmatprep.subr.mxu0 0.0
        %801 = vmatpush1.xpose.msra.mxu0 0.0
        %802 = vmatprep.subr.mxu0 0.0
        %803 = vmatpush1.xpose.msra.mxu0 0.0
        %804 = vmatprep.subr.mxu0 0.0
        %805 = vmatpush1.xpose.msra.mxu0 0.0
        %806 = vmatprep.subr.mxu0 0.0
        %807 = vmatpush1.xpose.msra.mxu0 0.0
        %808 = vmatprep.subr.mxu0 0.0
        %809 = vmatpush1.xpose.msra.mxu0 0.0
        %810 = vmatprep.subr.mxu0 0.0
        %811 = vmatpush1.xpose.msra.mxu0 0.0
        %812 = vmatprep.subr.mxu0 0.0
        %813 = vmatpush1.xpose.msra.mxu0 0.0
        %814 = vmatprep.mubr.f32.mxu0 0.0
        %815 = vmatmul.mubr.f32.gmra.mrb[0].mxu0 %v746
        %v816 = vpop.f32.mrb[0].mxu0
        %v817 = vadd.f32 %v319, %v816
        %v818 = vpop.f32.mrb[0].mxu0
        %819 = vdwg.mxu0
        %v820 = vsel %vm415, %v817, -inf
        %821 = vmax.xlane.f32.xlu0 %v820
        %v822 = vpop.xlane.xlu0 %821
        %v823 = vsub.f32 %v817, %v822
        %v824 = vmul.f32 %v823, 1.442695
        %v825 = vpow.pop %v824
        %v826 = vsel %vm415, %v825, 0.0
        %827 = vadd.xlane.f32.xlu0 %v826
        %v828 = vpop.xlane.xlu0 %827
        %v829 = vrcp.pop %v828
        %v830 = vmul.f32 %v825, %v829
        %831 = vrot.lane.b32.xlu0 %v409, 48
        %v832 = vpop.permute.xlu0 %831
        %v835 = vsel %vm415, %v830, 0
        %837 = vmatprep.subr.mxu0 0.0
        %838 = vmatpush1.msra.mxu0 %v832
        %839 = vmatprep.subr.mxu0 0.0
        %840 = vmatpush1.msra.mxu0 0.0
        %841 = vmatprep.subr.mxu0 0.0
        %842 = vmatpush1.msra.mxu0 0.0
        %843 = vmatprep.subr.mxu0 0.0
        %844 = vmatpush1.msra.mxu0 0.0
        %845 = vmatprep.subr.mxu0 0.0
        %846 = vmatpush1.msra.mxu0 0.0
        %847 = vmatprep.subr.mxu0 0.0
        %848 = vmatpush1.msra.mxu0 0.0
        %849 = vmatprep.subr.mxu0 0.0
        %850 = vmatpush1.msra.mxu0 0.0
        %851 = vmatprep.subr.mxu0 0.0
        %852 = vmatpush1.msra.mxu0 0.0
        %853 = vmatprep.subr.mxu0 0.0
        %854 = vmatpush1.msra.mxu0 0.0
        %855 = vmatprep.subr.mxu0 0.0
        %856 = vmatpush1.msra.mxu0 0.0
        %857 = vmatprep.subr.mxu0 0.0
        %858 = vmatpush1.msra.mxu0 0.0
        %859 = vmatprep.subr.mxu0 0.0
        %860 = vmatpush1.msra.mxu0 0.0
        %861 = vmatprep.subr.mxu0 0.0
        %862 = vmatpush1.msra.mxu0 0.0
        %863 = vmatprep.subr.mxu0 0.0
        %864 = vmatpush1.msra.mxu0 0.0
        %865 = vmatprep.subr.mxu0 0.0
        %866 = vmatpush1.msra.mxu0 0.0
        %867 = vmatprep.subr.mxu0 0.0
        %868 = vmatpush1.msra.mxu0 0.0
        %869 = vmatprep.subr.mxu0 0.0
        %870 = vmatpush1.msra.mxu0 0.0
        %871 = vmatprep.subr.mxu0 0.0
        %872 = vmatpush1.msra.mxu0 0.0
        %873 = vmatprep.subr.mxu0 0.0
        %874 = vmatpush1.msra.mxu0 0.0
        %875 = vmatprep.subr.mxu0 0.0
        %876 = vmatpush1.msra.mxu0 0.0
        %877 = vmatprep.subr.mxu0 0.0
        %878 = vmatpush1.msra.mxu0 0.0
        %879 = vmatprep.subr.mxu0 0.0
        %880 = vmatpush1.msra.mxu0 0.0
        %881 = vmatprep.subr.mxu0 0.0
        %882 = vmatpush1.msra.mxu0 0.0
        %883 = vmatprep.subr.mxu0 0.0
        %884 = vmatpush1.msra.mxu0 0.0
        %885 = vmatprep.subr.mxu0 0.0
        %886 = vmatpush1.msra.mxu0 0.0
        %887 = vmatprep.subr.mxu0 0.0
        %888 = vmatpush1.msra.mxu0 0.0
        %889 = vmatprep.subr.mxu0 0.0
        %890 = vmatpush1.msra.mxu0 0.0
        %891 = vmatprep.subr.mxu0 0.0
        %892 = vmatpush1.msra.mxu0 0.0
        %893 = vmatprep.subr.mxu0 0.0
        %894 = vmatpush1.msra.mxu0 0.0
        %895 = vmatprep.subr.mxu0 0.0
        %896 = vmatpush1.msra.mxu0 0.0
        %897 = vmatprep.subr.mxu0 0.0
        %898 = vmatpush1.msra.mxu0 0.0
        %899 = vmatprep.subr.mxu0 0.0
        %900 = vmatpush1.msra.mxu0 0.0
        %901 = vmatprep.mubr.f32.mxu0 0.0
        %902 = vmatmul.mubr.f32.gmra.mrb[0].mxu0 %v835
        %v903 = vpop.f32.mrb[0].mxu0
        %v904 = vadd.f32 0.0, %v903
        %v905 = vpop.f32.mrb[0].mxu0
        %906 = vdwg.mxu0
        %907 = vrot.lane.b32.xlu0 %v409, 104
        %v908 = vpop.permute.xlu0 %907
        %909 = vrot.lane.b32.xlu0 %v409, 72
        %v910 = vpop.permute.xlu0 %909
        %v911 = vsel %vm415, %v908, 0
        %v913 = vsel %vm415, %v910, 0
        %915 = vmatprep.subr.mxu0 0.0
        %916 = vmatpush1.xpose.msra.mxu0 %v913
        %917 = vmatprep.subr.mxu0 0.0
        %918 = vmatpush1.xpose.msra.mxu0 0.0
        %919 = vmatprep.subr.mxu0 0.0
        %920 = vmatpush1.xpose.msra.mxu0 0.0
        %921 = vmatprep.subr.mxu0 0.0
        %922 = vmatpush1.xpose.msra.mxu0 0.0
        %923 = vmatprep.subr.mxu0 0.0
        %924 = vmatpush1.xpose.msra.mxu0 0.0
        %925 = vmatprep.subr.mxu0 0.0
        %926 = vmatpush1.xpose.msra.mxu0 0.0
        %927 = vmatprep.subr.mxu0 0.0
        %928 = vmatpush1.xpose.msra.mxu0 0.0
        %929 = vmatprep.subr.mxu0 0.0
        %930 = vmatpush1.xpose.msra.mxu0 0.0
        %931 = vmatprep.subr.mxu0 0.0
        %932 = vmatpush1.xpose.msra.mxu0 0.0
        %933 = vmatprep.subr.mxu0 0.0
        %934 = vmatpush1.xpose.msra.mxu0 0.0
        %935 = vmatprep.subr.mxu0 0.0
        %936 = vmatpush1.xpose.msra.mxu0 0.0
        %937 = vmatprep.subr.mxu0 0.0
        %938 = vmatpush1.xpose.msra.mxu0 0.0
        %939 = vmatprep.subr.mxu0 0.0
        %940 = vmatpush1.xpose.msra.mxu0 0.0
        %941 = vmatprep.subr.mxu0 0.0
        %942 = vmatpush1.xpose.msra.mxu0 0.0
        %943 = vmatprep.subr.mxu0 0.0
        %944 = vmatpush1.xpose.msra.mxu0 0.0
        %945 = vmatprep.subr.mxu0 0.0
        %946 = vmatpush1.xpose.msra.mxu0 0.0
        %947 = vmatprep.subr.mxu0 0.0
        %948 = vmatpush1.xpose.msra.mxu0 0.0
        %949 = vmatprep.subr.mxu0 0.0
        %950 = vmatpush1.xpose.msra.mxu0 0.0
        %951 = vmatprep.subr.mxu0 0.0
        %952 = vmatpush1.xpose.msra.mxu0 0.0
        %953 = vmatprep.subr.mxu0 0.0
        %954 = vmatpush1.xpose.msra.mxu0 0.0
        %955 = vmatprep.subr.mxu0 0.0
        %956 = vmatpush1.xpose.msra.mxu0 0.0
        %957 = vmatprep.subr.mxu0 0.0
        %958 = vmatpush1.xpose.msra.mxu0 0.0
        %959 = vmatprep.subr.mxu0 0.0
        %960 = vmatpush1.xpose.msra.mxu0 0.0
        %961 = vmatprep.subr.mxu0 0.0
        %962 = vmatpush1.xpose.msra.mxu0 0.0
        %963 = vmatprep.subr.mxu0 0.0
        %964 = vmatpush1.xpose.msra.mxu0 0.0
        %965 = vmatprep.subr.mxu0 0.0
        %966 = vmatpush1.xpose.msra.mxu0 0.0
        %967 = vmatprep.subr.mxu0 0.0
        %968 = vmatpush1.xpose.msra.mxu0 0.0
        %969 = vmatprep.subr.mxu0 0.0
        %970 = vmatpush1.xpose.msra.mxu0 0.0
        %971 = vmatprep.subr.mxu0 0.0
        %972 = vmatpush1.xpose.msra.mxu0 0.0
        %973 = vmatprep.subr.mxu0 0.0
        %974 = vmatpush1.xpose.msra.mxu0 0.0
        %975 = vmatprep.subr.mxu0 0.0
        %976 = vmatpush1.xpose.msra.mxu0 0.0
        %977 = vmatprep.subr.mxu0 0.0
        %978 = vmatpush1.xpose.msra.mxu0 0.0
        %979 = vmatprep.mubr.f32.mxu0 0.0
        %980 = vmatmul.mubr.f32.gmra.mrb[0].mxu0 %v911
        %v981 = vpop.f32.mrb[0].mxu0
        %v982 = vadd.f32 %v319, %v981
        %v983 = vpop.f32.mrb[0].mxu0
        %984 = vdwg.mxu0
        %v985 = vsel %vm415, %v982, -inf
        %986 = vmax.xlane.f32.xlu0 %v985
        %v987 = vpop.xlane.xlu0 %986
        %v988 = vsub.f32 %v982, %v987
        %v989 = vmul.f32 %v988, 1.442695
        %v990 = vpow.pop %v989
        %v991 = vsel %vm415, %v990, 0.0
        %992 = vadd.xlane.f32.xlu0 %v991
        %v993 = vpop.xlane.xlu0 %992
        %v994 = vrcp.pop %v993
        %v995 = vmul.f32 %v990, %v994
        %996 = vrot.lane.b32.xlu0 %v409, 40
        %v997 = vpop.permute.xlu0 %996
        %v1000 = vsel %vm415, %v995, 0
        %1002 = vmatprep.subr.mxu0 0.0
        %1003 = vmatpush1.msra.mxu0 %v997
        %1004 = vmatprep.subr.mxu0 0.0
        %1005 = vmatpush1.msra.mxu0 0.0
        %1006 = vmatprep.subr.mxu0 0.0
        %1007 = vmatpush1.msra.mxu0 0.0
        %1008 = vmatprep.subr.mxu0 0.0
        %1009 = vmatpush1.msra.mxu0 0.0
        %1010 = vmatprep.subr.mxu0 0.0
        %1011 = vmatpush1.msra.mxu0 0.0
        %1012 = vmatprep.subr.mxu0 0.0
        %1013 = vmatpush1.msra.mxu0 0.0
        %1014 = vmatprep.subr.mxu0 0.0
        %1015 = vmatpush1.msra.mxu0 0.0
        %1016 = vmatprep.subr.mxu0 0.0
        %1017 = vmatpush1.msra.mxu0 0.0
        %1018 = vmatprep.subr.mxu0 0.0
        %1019 = vmatpush1.msra.mxu0 0.0
        %1020 = vmatprep.subr.mxu0 0.0
        %1021 = vmatpush1.msra.mxu0 0.0
        %1022 = vmatprep.subr.mxu0 0.0
        %1023 = vmatpush1.msra.mxu0 0.0
        %1024 = vmatprep.subr.mxu0 0.0
        %1025 = vmatpush1.msra.mxu0 0.0
        %1026 = vmatprep.subr.mxu0 0.0
        %1027 = vmatpush1.msra.mxu0 0.0
        %1028 = vmatprep.subr.mxu0 0.0
        %1029 = vmatpush1.msra.mxu0 0.0
        %1030 = vmatprep.subr.mxu0 0.0
        %1031 = vmatpush1.msra.mxu0 0.0
        %1032 = vmatprep.subr.mxu0 0.0
        %1033 = vmatpush1.msra.mxu0 0.0
        %1034 = vmatprep.subr.mxu0 0.0
        %1035 = vmatpush1.msra.mxu0 0.0
        %1036 = vmatprep.subr.mxu0 0.0
        %1037 = vmatpush1.msra.mxu0 0.0
        %1038 = vmatprep.subr.mxu0 0.0
        %1039 = vmatpush1.msra.mxu0 0.0
        %1040 = vmatprep.subr.mxu0 0.0
        %1041 = vmatpush1.msra.mxu0 0.0
        %1042 = vmatprep.subr.mxu0 0.0
        %1043 = vmatpush1.msra.mxu0 0.0
        %1044 = vmatprep.subr.mxu0 0.0
        %1045 = vmatpush1.msra.mxu0 0.0
        %1046 = vmatprep.subr.mxu0 0.0
        %1047 = vmatpush1.msra.mxu0 0.0
        %1048 = vmatprep.subr.mxu0 0.0
        %1049 = vmatpush1.msra.mxu0 0.0
        %1050 = vmatprep.subr.mxu0 0.0
        %1051 = vmatpush1.msra.mxu0 0.0
        %1052 = vmatprep.subr.mxu0 0.0
        %1053 = vmatpush1.msra.mxu0 0.0
        %1054 = vmatprep.subr.mxu0 0.0
        %1055 = vmatpush1.msra.mxu0 0.0
        %1056 = vmatprep.subr.mxu0 0.0
        %1057 = vmatpush1.msra.mxu0 0.0
        %1058 = vmatprep.subr.mxu0 0.0
        %1059 = vmatpush1.msra.mxu0 0.0
        %1060 = vmatprep.subr.mxu0 0.0
        %1061 = vmatpush1.msra.mxu0 0.0
        %1062 = vmatprep.subr.mxu0 0.0
        %1063 = vmatpush1.msra.mxu0 0.0
        %1064 = vmatprep.subr.mxu0 0.0
        %1065 = vmatpush1.msra.mxu0 0.0
        %1066 = vmatprep.mubr.f32.mxu0 0.0
        %1067 = vmatmul.mubr.f32.gmra.mrb[0].mxu0 %v1000
        %v1068 = vpop.f32.mrb[0].mxu0
        %v1069 = vadd.f32 0.0, %v1068
        %v1070 = vpop.f32.mrb[0].mxu0
        %1071 = vdwg.mxu0
        %1073 = vrot.lane.b32.xlu0 %v739, 8
        %v1074 = vpop.permute.xlu0 %1073
        %1077 = vrot.lane.b32.xlu0 %v904, 16
        %v1078 = vpop.permute.xlu0 %1077
        %1081 = vrot.lane.b32.xlu0 %v1069, 24
        %v1082 = vpop.permute.xlu0 %1081
        %v1084 = vsel %vm415, %v574, %v1074
        %vm1085 = vcmask 130048
        %v1086 = vsel %vm1085, %v1084, %v1078
        %vm1087 = vcmask 195584
        %v1088 = vsel %vm1087, %v1086, %v1082
        %v1089 = vld [vmem:[%s3] sm:$0xff]
        %v1090 = vld [vmem:[%s3 + $0x8] sm:$0xff]
        %v1091 = vld [vmem:[%s3 + $0x10] sm:$0xff]
        %v1092 = vld [vmem:[%s3 + $0x18] sm:$0xff]
        %v1093 = vlaneseq
        %v1094 = vshrl.u32 %v1093, 7
        %v1095 = vsub.s32 0, %v1094
        %v1096 = vrot.slane %v321, %v1095
        %v1098 = vsel %vm338, %v1088, 0
        %1100 = vmatprep.subr.mxu0 0.0
        %1101 = vmatpush1.msra.mxu0 %v1089
        %1102 = vmatprep.subr.mxu0 0.0
        %1103 = vmatpush1.msra.mxu0 %v1090
        %1104 = vmatprep.subr.mxu0 0.0
        %1105 = vmatpush1.msra.mxu0 %v1091
        %1106 = vmatprep.subr.mxu0 0.0
        %1107 = vmatpush1.msra.mxu0 %v1092
        %1108 = vmatprep.subr.mxu0 0.0
        %1109 = vmatpush1.msra.mxu0 0.0
        %1110 = vmatprep.subr.mxu0 0.0
        %1111 = vmatpush1.msra.mxu0 0.0
        %1112 = vmatprep.subr.mxu0 0.0
        %1113 = vmatpush1.msra.mxu0 0.0
        %1114 = vmatprep.subr.mxu0 0.0
        %1115 = vmatpush1.msra.mxu0 0.0
        %1116 = vmatprep.subr.mxu0 0.0
        %1117 = vmatpush1.msra.mxu0 0.0
        %1118 = vmatprep.subr.mxu0 0.0
        %1119 = vmatpush1.msra.mxu0 0.0
        %1120 = vmatprep.subr.mxu0 0.0
        %1121 = vmatpush1.msra.mxu0 0.0
        %1122 = vmatprep.subr.mxu0 0.0
        %1123 = vmatpush1.msra.mxu0 0.0
        %1124 = vmatprep.subr.mxu0 0.0
        %1125 = vmatpush1.msra.mxu0 0.0
        %1126 = vmatprep.subr.mxu0 0.0
        %1127 = vmatpush1.msra.mxu0 0.0
        %1128 = vmatprep.subr.mxu0 0.0
        %1129 = vmatpush1.msra.mxu0 0.0
        %1130 = vmatprep.subr.mxu0 0.0
        %1131 = vmatpush1.msra.mxu0 0.0
        %1132 = vmatprep.subr.mxu0 0.0
        %1133 = vmatpush1.msra.mxu0 0.0
        %1134 = vmatprep.subr.mxu0 0.0
        %1135 = vmatpush1.msra.mxu0 0.0
        %1136 = vmatprep.subr.mxu0 0.0
        %1137 = vmatpush1.msra.mxu0 0.0
        %1138 = vmatprep.subr.mxu0 0.0
        %1139 = vmatpush1.msra.mxu0 0.0
        %1140 = vmatprep.subr.mxu0 0.0
        %1141 = vmatpush1.msra.mxu0 0.0
        %1142 = vmatprep.subr.mxu0 0.0
        %1143 = vmatpush1.msra.mxu0 0.0
        %1144 = vmatprep.subr.mxu0 0.0
        %1145 = vmatpush1.msra.mxu0 0.0
        %1146 = vmatprep.subr.mxu0 0.0
        %1147 = vmatpush1.msra.mxu0 0.0
        %1148 = vmatprep.subr.mxu0 0.0
        %1149 = vmatpush1.msra.mxu0 0.0
        %1150 = vmatprep.subr.mxu0 0.0
        %1151 = vmatpush1.msra.mxu0 0.0
        %1152 = vmatprep.subr.mxu0 0.0
        %1153 = vmatpush1.msra.mxu0 0.0
        %1154 = vmatprep.subr.mxu0 0.0
        %1155 = vmatpush1.msra.mxu0 0.0
        %1156 = vmatprep.subr.mxu0 0.0
        %1157 = vmatpush1.msra.mxu0 0.0
        %1158 = vmatprep.subr.mxu0 0.0
        %1159 = vmatpush1.msra.mxu0 0.0
        %1160 = vmatprep.subr.mxu0 0.0
        %1161 = vmatpush1.msra.mxu0 0.0
        %1162 = vmatprep.subr.mxu0 0.0
        %1163 = vmatpush1.msra.mxu0 0.0
        %1164 = vmatprep.mubr.f32.mxu0 0.0
        %1165 = vmatmul.mubr.f32.gmra.mrb[0].mxu0 %v1098
        %v1166 = vpop.f32.mrb[0].mxu0
        %v1167 = vadd.f32 %v1096, %v1166
        %v1168 = vpop.f32.mrb[0].mxu0
        %1169 = vdwg.mxu0
        %v1170 = vadd.f32 %v1167, %v318
        %v1171 = vsel %vm338, %v1170, 0.0
        %1172 = vadd.xlane.f32.xlu0 %v1171
        %v1173 = vpop.xlane.xlu0 %1172
        %v1174 = vrcp.pop 32.0
        %v1175 = vmul.f32 %v1173, %v1174
        %v1176 = vsub.f32 %v1170, %v1175
        %v1177 = vmul.f32 %v1176, %v1176
        %v1178 = vsel %vm338, %v1177, 0.0
        %1179 = vadd.xlane.f32.xlu0 %v1178
        %v1180 = vpop.xlane.xlu0 %1179
        %v1181 = vmul.f32 %v1180, %v1174
        %v1182 = vadd.f32 %v1181, 1e-12
        %v1183 = vrsqrt.pop %v1182
        %v1184 = vmul.f32 %v1176, %v1183
        %v1185 = vlaneseq
        %v1186 = vshrl.u32 %v1185, 7
        %v1187 = vsub.s32 0, %v1186
        %v1188 = vrot.slane %v322, %v1187
        %v1189 = vmul.f32 %v1184, %v1188
        %v1190 = vlaneseq
        %v1191 = vshrl.u32 %v1190, 7
        %v1192 = vsub.s32 0, %v1191
        %v1193 = vrot.slane %v323, %v1192
        %v1194 = vadd.f32 %v1189, %v1193
        %v1196 = vlaneseq
        %v1197 = vshrl.u32 %v1196, 7
        %v1198 = vsub.s32 0, %v1197
        %v1199 = vrot.slane %v327, %v1198
        %1205 = vrot.lane.b32.xlu0 %v1089, 96
        %v1206 = vpop.permute.xlu0 %1205
        %1207 = vrot.lane.b32.xlu0 %v1090, 96
        %v1208 = vpop.permute.xlu0 %1207
        %1209 = vrot.lane.b32.xlu0 %v1091, 96
        %v1210 = vpop.permute.xlu0 %1209
        %1211 = vrot.lane.b32.xlu0 %v1092, 96
        %v1212 = vpop.permute.xlu0 %1211
        %v1218 = vsel %vm338, %v1194, 0
        %1220 = vmatprep.subr.mxu0 0.0
        %1221 = vmatpush1.msra.mxu0 %v1206
        %1222 = vmatprep.subr.mxu0 0.0
        %1223 = vmatpush1.msra.mxu0 %v1208
        %1224 = vmatprep.subr.mxu0 0.0
        %1225 = vmatpush1.msra.mxu0 %v1210
        %1226 = vmatprep.subr.mxu0 0.0
        %1227 = vmatpush1.msra.mxu0 %v1212
        %1228 = vmatprep.subr.mxu0 0.0
        %1229 = vmatpush1.msra.mxu0 0.0
        %1230 = vmatprep.subr.mxu0 0.0
        %1231 = vmatpush1.msra.mxu0 0.0
        %1232 = vmatprep.subr.mxu0 0.0
        %1233 = vmatpush1.msra.mxu0 0.0
        %1234 = vmatprep.subr.mxu0 0.0
        %1235 = vmatpush1.msra.mxu0 0.0
        %1236 = vmatprep.subr.mxu0 0.0
        %1237 = vmatpush1.msra.mxu0 0.0
        %1238 = vmatprep.subr.mxu0 0.0
        %1239 = vmatpush1.msra.mxu0 0.0
        %1240 = vmatprep.subr.mxu0 0.0
        %1241 = vmatpush1.msra.mxu0 0.0
        %1242 = vmatprep.subr.mxu0 0.0
        %1243 = vmatpush1.msra.mxu0 0.0
        %1244 = vmatprep.subr.mxu0 0.0
        %1245 = vmatpush1.msra.mxu0 0.0
        %1246 = vmatprep.subr.mxu0 0.0
        %1247 = vmatpush1.msra.mxu0 0.0
        %1248 = vmatprep.subr.mxu0 0.0
        %1249 = vmatpush1.msra.mxu0 0.0
        %1250 = vmatprep.subr.mxu0 0.0
        %1251 = vmatpush1.msra.mxu0 0.0
        %1252 = vmatprep.subr.mxu0 0.0
        %1253 = vmatpush1.msra.mxu0 0.0
        %1254 = vmatprep.subr.mxu0 0.0
        %1255 = vmatpush1.msra.mxu0 0.0
        %1256 = vmatprep.subr.mxu0 0.0
        %1257 = vmatpush1.msra.mxu0 0.0
        %1258 = vmatprep.subr.mxu0 0.0
        %1259 = vmatpush1.msra.mxu0 0.0
        %1260 = vmatprep.subr.mxu0 0.0
        %1261 = vmatpush1.msra.mxu0 0.0
        %1262 = vmatprep.subr.mxu0 0.0
        %1263 = vmatpush1.msra.mxu0 0.0
        %1264 = vmatprep.subr.mxu0 0.0
        %1265 = vmatpush1.msra.mxu0 0.0
        %1266 = vmatprep.subr.mxu0 0.0
        %1267 = vmatpush1.msra.mxu0 0.0
        %1268 = vmatprep.subr.mxu0 0.0
        %1269 = vmatpush1.msra.mxu0 0.0
        %1270 = vmatprep.subr.mxu0 0.0
        %1271 = vmatpush1.msra.mxu0 0.0
        %1272 = vmatprep.subr.mxu0 0.0
        %1273 = vmatpush1.msra.mxu0 0.0
        %1274 = vmatprep.subr.mxu0 0.0
        %1275 = vmatpush1.msra.mxu0 0.0
        %1276 = vmatprep.subr.mxu0 0.0
        %1277 = vmatpush1.msra.mxu0 0.0
        %1278 = vmatprep.subr.mxu0 0.0
        %1279 = vmatpush1.msra.mxu0 0.0
        %1280 = vmatprep.subr.mxu0 0.0
        %1281 = vmatpush1.msra.mxu0 0.0
        %1282 = vmatprep.subr.mxu0 0.0
        %1283 = vmatpush1.msra.mxu0 0.0
        %1284 = vmatprep.mubr.f32.mxu0 0.0
        %1285 = vmatmul.mubr.f32.gmra.mrb[0].mxu0 %v1218
        %v1286 = vpop.f32.mrb[0].mxu0
        %v1287 = vadd.f32 %v1199, %v1286
        %v1288 = vpop.f32.mrb[0].mxu0
        %1289 = vdwg.mxu0
        %v1290 = vmul.f32 %v1287, 0.5
        %v1291 = vrcp.pop 1.4142135
        %v1292 = vmul.f32 %v1287, %v1291
        %v1293 = verf.f32.pop %v1292
        %v1294 = vadd.f32 %v1293, 1.0
        %v1295 = vmul.f32 %v1290, %v1294
        %v1296 = vld [vmem:[%s4] sm:$0xff]
        %v1297 = vld [vmem:[%s4 + $0x8] sm:$0xff]
        %v1298 = vld [vmem:[%s4 + $0x10] sm:$0xff]
        %v1299 = vld [vmem:[%s4 + $0x18] sm:$0xff]
        %v1300 = vld [vmem:[%s4 + $0x20] sm:$0xff]
        %v1301 = vld [vmem:[%s4 + $0x28] sm:$0xff]
        %v1302 = vld [vmem:[%s4 + $0x30] sm:$0xff]
        %v1303 = vld [vmem:[%s4 + $0x38] sm:$0xff]
        %v1304 = vlaneseq
        %v1305 = vshrl.u32 %v1304, 7
        %v1306 = vsub.s32 0, %v1305
        %v1307 = vrot.slane %v324, %v1306
        %vm1308 = vcmask 523264
        %v1310 = vsel %vm1308, %v1295, 0
        %1312 = vmatprep.subr.mxu0 0.0
        %1313 = vmatpush1.msra.mxu0 %v1296
        %1314 = vmatprep.subr.mxu0 0.0
        %1315 = vmatpush1.msra.mxu0 %v1297
        %1316 = vmatprep.subr.mxu0 0.0
        %1317 = vmatpush1.msra.mxu0 %v1298
        %1318 = vmatprep.subr.mxu0 0.0
        %1319 = vmatpush1.msra.mxu0 %v1299
        %1320 = vmatprep.subr.mxu0 0.0
        %1321 = vmatpush1.msra.mxu0 %v1300
        %1322 = vmatprep.subr.mxu0 0.0
        %1323 = vmatpush1.msra.mxu0 %v1301
        %1324 = vmatprep.subr.mxu0 0.0
        %1325 = vmatpush1.msra.mxu0 %v1302
        %1326 = vmatprep.subr.mxu0 0.0
        %1327 = vmatpush1.msra.mxu0 %v1303
        %1328 = vmatprep.subr.mxu0 0.0
        %1329 = vmatpush1.msra.mxu0 0.0
        %1330 = vmatprep.subr.mxu0 0.0
        %1331 = vmatpush1.msra.mxu0 0.0
        %1332 = vmatprep.subr.mxu0 0.0
        %1333 = vmatpush1.msra.mxu0 0.0
        %1334 = vmatprep.subr.mxu0 0.0
        %1335 = vmatpush1.msra.mxu0 0.0
        %1336 = vmatprep.subr.mxu0 0.0
        %1337 = vmatpush1.msra.mxu0 0.0
        %1338 = vmatprep.subr.mxu0 0.0
        %1339 = vmatpush1.msra.mxu0 0.0
        %1340 = vmatprep.subr.mxu0 0.0
        %1341 = vmatpush1.msra.mxu0 0.0
        %1342 = vmatprep.subr.mxu0 0.0
        %1343 = vmatpush1.msra.mxu0 0.0
        %1344 = vmatprep.subr.mxu0 0.0
        %1345 = vmatpush1.msra.mxu0 0.0
        %1346 = vmatprep.subr.mxu0 0.0
        %1347 = vmatpush1.msra.mxu0 0.0
        %1348 = vmatprep.subr.mxu0 0.0
        %1349 = vmatpush1.msra.mxu0 0.0
        %1350 = vmatprep.subr.mxu0 0.0
        %1351 = vmatpush1.msra.mxu0 0.0
        %1352 = vmatprep.subr.mxu0 0.0
        %1353 = vmatpush1.msra.mxu0 0.0
        %1354 = vmatprep.subr.mxu0 0.0
        %1355 = vmatpush1.msra.mxu0 0.0
        %1356 = vmatprep.subr.mxu0 0.0
        %1357 = vmatpush1.msra.mxu0 0.0
        %1358 = vmatprep.subr.mxu0 0.0
        %1359 = vmatpush1.msra.mxu0 0.0
        %1360 = vmatprep.subr.mxu0 0.0
        %1361 = vmatpush1.msra.mxu0 0.0
        %1362 = vmatprep.subr.mxu0 0.0
        %1363 = vmatpush1.msra.mxu0 0.0
        %1364 = vmatprep.subr.mxu0 0.0
        %1365 = vmatpush1.msra.mxu0 0.0
        %1366 = vmatprep.subr.mxu0 0.0
        %1367 = vmatpush1.msra.mxu0 0.0
        %1368 = vmatprep.subr.mxu0 0.0
        %1369 = vmatpush1.msra.mxu0 0.0
        %1370 = vmatprep.subr.mxu0 0.0
        %1371 = vmatpush1.msra.mxu0 0.0
        %1372 = vmatprep.subr.mxu0 0.0
        %1373 = vmatpush1.msra.mxu0 0.0
        %1374 = vmatprep.subr.mxu0 0.0
        %1375 = vmatpush1.msra.mxu0 0.0
        %1376 = vmatprep.mubr.f32.mxu0 0.0
        %1377 = vmatmul.mubr.f32.gmra.mrb[0].mxu0 %v1310
        %v1378 = vpop.f32.mrb[0].mxu0
        %v1379 = vadd.f32 %v1307, %v1378
        %v1380 = vpop.f32.mrb[0].mxu0
        %1381 = vdwg.mxu0
        %v1382 = vadd.f32 %v1379, %v1194
        %v1383 = vsel %vm338, %v1382, 0.0
        %1384 = vadd.xlane.f32.xlu0 %v1383
        %v1385 = vpop.xlane.xlu0 %1384
        %v1386 = vmul.f32 %v1385, %v1174
        %v1387 = vsub.f32 %v1382, %v1386
        %v1388 = vmul.f32 %v1387, %v1387
        %v1389 = vsel %vm338, %v1388, 0.0
        %1390 = vadd.xlane.f32.xlu0 %v1389
        %v1391 = vpop.xlane.xlu0 %1390
        %v1392 = vmul.f32 %v1391, %v1174
        %v1393 = vadd.f32 %v1392, 1e-12
        %v1394 = vrsqrt.pop %v1393
        %v1395 = vmul.f32 %v1387, %v1394
        %v1396 = vlaneseq
        %v1397 = vshrl.u32 %v1396, 7
        %v1398 = vsub.s32 0, %v1397
        %v1399 = vrot.slane %v325, %v1398
        %v1400 = vmul.f32 %v1395, %v1399
        %v1401 = vlaneseq
        %v1402 = vshrl.u32 %v1401, 7
        %v1403 = vsub.s32 0, %v1402
        %v1404 = vrot.slane %v326, %v1403
        %v1405 = vadd.f32 %v1400, %v1404
        %1406 = vst.msk [vmem:[%s309] sm:$0xff] %vm338, %v1405
        %s1407 = sand.u32 %s208, 1
        %s1408 = scalar_lea.sflag [#allocation3], %s1407
        %s1409 = sand.u32 %s208, 1
        %s1410 = smul.addr %s1409, 8
        %s1411 = scalar_lea.vmem [#allocation2], %s1410
        // Predicated region
        $region53: #{graph_layer.1} parent=51 // pred_check
          %p1412 = pneg %p218
        $region54: #{graph_layer.1} parent=51 // pred_check_branch
          %1414 = sbr.rel (%p1412) target = $region56
        $region55: #{graph_layer.1} parent=51 // pred_region
          %s1416 = ssub.s32 128, 128
          %1417 = vsyncadd %s1408, %s1416
          %s1418 = smul.addr %s22, 128
          %s1419 = scalar_lea.hbm %s8, %s1418
          %s1421 = sshll.u32 %s1411, 4
          %s1422 = int_to_ptr.vmem [resolvable:$true] %s1421
          %1424 = dma.vmem_to_hbm [thread:$0]  %s1422, 128, %s1419, %s1408
        $region56: #{graph_layer.1} parent=51 // pred_fallthru
          _
      $region52: #{graph_layer.1} parent=5 // pred_fallthru
        _
      %p1425 = scmp.le.s32.totalorder 2, %s17
      // Predicated region
      $region57: #{graph_layer.1} parent=5 // pred_check
        %p1426 = pneg %p1425
      $region58: #{graph_layer.1} parent=5 // pred_check_branch
        %1428 = sbr.rel (%p1426) target = $region60
      $region59: #{graph_layer.1} parent=5 // pred_region
        %s1429 = ssub.s32 %s17, 2
        // Predicated region
        $region61: #{graph_layer.1} parent=59 // pred_check
          %p1430 = pneg %p224
        $region62: #{graph_layer.1} parent=59 // pred_check_branch
          %1432 = sbr.rel (%p1430) target = $region64
        $region63: #{graph_layer.1} parent=59 // pred_region
          %s1433 = sand.u32 %s209, 1
          %s1434 = scalar_lea.sflag [#allocation3], %s1433
          %s1435 = sand.u32 %s209, 1
          %s1436 = smul.addr %s1435, 8
          %s1437 = scalar_lea.vmem [#allocation2], %s1436
          %1438 = dma.done %s1434, 128
        $region64: #{graph_layer.1} parent=59 // pred_fallthru
          _
      $region60: #{graph_layer.1} parent=5 // pred_fallthru
        _
    $region6: #{graph_layer.1} parent=1 // loop_footer
      %s21 = sadd.s32 1, %s17
    $region7: #{graph_layer.1} parent=1 // loop_footer_branch
      %16 = sbr.rel target = $region3
    $region8: #{graph_layer.1} parent=1 // loop_exit
      _
    %1439 = vsyncpa [#allocation3], 1
    %s1440 = scalar_lea.sflag [#allocation3], 1
    %1441 = vsyncpa %s1440, 1

</llo_original>
